<compile_context>
chip_gen: v6e
topology: v6e:2x2x1
jax: 0.10.0
libtpu: 0.0.40
codegen_flags: <defaults>
</compile_context>

<pallas_src>
import functools
import math

import jax
import jax.numpy as jnp
from jax.experimental import pallas as pl
from jax.experimental.pallas import tpu as pltpu


# ---------------------------------------------------------------------------
# shared helpers
# ---------------------------------------------------------------------------

def _gelu_tanh(v):
    # tanh-approximate GELU.
    # TODO(synk): nn.GELU() default is the exact erf GELU; swap in an erf
    # implementation if exact parity with PyTorch is required.
    c = math.sqrt(2.0 / math.pi)
    return 0.5 * v * (1.0 + jnp.tanh(c * (v + 0.044715 * v * v * v)))


def _pick_batch_tile(B, N, L, target_rows=256):
    """Largest divisor of B whose row slab stays <= target_rows, preferring
    a grid of >= 2 steps so both v7x TensorCores get work."""
    per_elem_rows = max(N, L)
    bt = 1
    for cand in range(1, B + 1):
        if B % cand == 0 and cand * per_elem_rows <= max(target_rows, per_elem_rows):
            bt = cand
    if B // bt < 2 and B >= 2:
        for cand in range(bt - 1, 0, -1):
            if B % cand == 0 and B // cand >= 2:
                bt = cand
                break
    return bt


# ---------------------------------------------------------------------------
# fused per-layer kernel: attention + feed-forward (+ optional final LN)
# ---------------------------------------------------------------------------

def _layer_kernel(*refs, heads, dim_head, pos_scale, attn_scale,
                  ln_eps, rms_eps, shared_kv, apply_final_ln, mxu_dtype):
    it = iter(refs)
    x_ref, pos_ref, lat_ref = next(it), next(it), next(it)
    lnx_g, lnx_b, lnl_g, lnl_b = next(it), next(it), next(it), next(it)
    wq_ref, wkx_ref, wvx_ref = next(it), next(it), next(it)
    if shared_kv:
        wkl_ref, wvl_ref = wkx_ref, wvx_ref
    else:
        wkl_ref, wvl_ref = next(it), next(it)
    rmsq_ref, rmsk_ref = next(it), next(it)
    wo_ref, bo_ref = next(it), next(it)
    ffg_ref, ffb_ref = next(it), next(it)
    w1_ref, b1_ref, w2_ref, b2_ref = next(it), next(it), next(it), next(it)
    fing_ref, finb_ref = next(it), next(it)
    o_ref = next(it)

    f32 = jnp.float32
    bt, N, dim = x_ref.shape
    _, L, Dl = lat_ref.shape
    Nk = N + L
    rows_l = bt * L

    def layer_norm(v, g_ref, b_ref):
        mu = jnp.mean(v, axis=-1, keepdims=True)
        var = jnp.mean(jnp.square(v - mu), axis=-1, keepdims=True)
        return (v - mu) * jax.lax.rsqrt(var + ln_eps) * g_ref[...].astype(f32) \
            + b_ref[...].astype(f32)

    def rms_norm(v, g_ref):
        # x * g * rsqrt(max(mean(x^2), eps^2)) == x / clamp(||x||*d^-0.5, eps) * g
        ms = jnp.mean(jnp.square(v), axis=-1, keepdims=True)
        return v * jax.lax.rsqrt(jnp.maximum(ms, rms_eps * rms_eps)) \
            * g_ref[...].astype(f32)

    # ---- attention sub-layer ------------------------------------------------
    # x_pos = x + pos_emb * dim**-0.5 (fused; x_pos never written to HBM)
    x = x_ref[...].astype(f32) + pos_ref[...].astype(f32)[None] * pos_scale
    lat = lat_ref[...].astype(f32).reshape(rows_l, Dl)          # f32 residual stream

    xn_f = layer_norm(x.reshape(bt * N, dim), lnx_g, lnx_b)     # norm(x)
    latn_f = layer_norm(lat, lnl_g, lnl_b)                      # norm_latents(latents)
    xn = xn_f.astype(mxu_dtype)
    latn = latn_f.astype(mxu_dtype)

    if shared_kv:
        # dim == dim_latent and to_kv is shared: one (bt*(N+L), dim) slab feeds
        # both K and V projections (single weight set, single input concat).
        kv_in = jnp.concatenate(
            [xn_f.reshape(bt, N, dim), latn_f.reshape(bt, L, Dl)], axis=1
        ).reshape(bt * Nk, dim).astype(mxu_dtype)

    # TODO(synk): attention mask path (masked_fill) not implemented; mask=None only.
    # Per-head loop (heads is a small compile-time constant; weights arrive
    # pre-split per head so no lane-misaligned activation slices are needed).
    acc = lat + bo_ref[...].astype(f32)                         # residual + to_out bias
    for h in range(heads):
        q_h = jnp.dot(latn, wq_ref[h], preferred_element_type=f32)        # (rows_l, dh)
        if shared_kv:
            k_h = jnp.dot(kv_in, wkx_ref[h], preferred_element_type=f32)  # (bt*Nk, dh)
            v_h = jnp.dot(kv_in, wvx_ref[h], preferred_element_type=f32)
        else:
            k_h = jnp.concatenate(
                [jnp.dot(xn, wkx_ref[h], preferred_element_type=f32
                         ).reshape(bt, N, dim_head),
                 jnp.dot(latn, wkl_ref[h], preferred_element_type=f32
                         ).reshape(bt, L, dim_head)],
                axis=1).reshape(bt * Nk, dim_head)
            v_h = jnp.concatenate(
                [jnp.dot(xn, wvx_ref[h], preferred_element_type=f32
                         ).reshape(bt, N, dim_head),
                 jnp.dot(latn, wvl_ref[h], preferred_element_type=f32
                         ).reshape(bt, L, dim_head)],
                axis=1).reshape(bt * Nk, dim_head)

        q_h = (rms_norm(q_h, rmsq_ref) * attn_scale).astype(mxu_dtype)
        q_h = q_h.reshape(bt, L, dim_head)
        k_h = rms_norm(k_h, rmsk_ref).astype(mxu_dtype).reshape(bt, Nk, dim_head)
        v_h = v_h.astype(mxu_dtype).reshape(bt, Nk, dim_head)

        sim = jnp.einsum("bid,bjd->bij", q_h, k_h,
                         preferred_element_type=f32)                       # (bt, L, Nk)
        m = jnp.max(sim, axis=-1, keepdims=True)
        p = jnp.exp(sim - m)
        # softmax normalization via the EUP reciprocal (frees a VALU divide)
        attn = p * pl.reciprocal(jnp.sum(p, axis=-1, keepdims=True), approx=True)

        o_h = jnp.einsum("bij,bjd->bid", attn.astype(mxu_dtype), v_h,
                         preferred_element_type=f32)                       # (bt, L, dh)
        # Per-head output projection accumulated straight into the (rows, Dl)
        # slab -- no (h d) concat, no lane-misaligned slices.
        acc = acc + jnp.dot(o_h.reshape(rows_l, dim_head).astype(mxu_dtype),
                            wo_ref[h], preferred_element_type=f32)

    lat = acc                                                   # attn out + bias + residual

    # ---- feed-forward sub-layer ----------------------------------------------
    hn = layer_norm(lat, ffg_ref, ffb_ref).astype(mxu_dtype)
    hmid = jnp.dot(hn, w1_ref[...], preferred_element_type=f32) \
        + b1_ref[...].astype(f32)
    hmid = _gelu_tanh(hmid).astype(mxu_dtype)                   # Dropout(p=0) == identity
    y = jnp.dot(hmid, w2_ref[...], preferred_element_type=f32) \
        + b2_ref[...].astype(f32)
    lat = lat + y                                               # residual

    if apply_final_ln:                                          # fused final LayerNorm
        lat = layer_norm(lat, fing_ref, finb_ref)

    o_ref[...] = lat.reshape(bt, L, Dl).astype(o_ref.dtype)


def _perceiver_layer(x, pos_rows, latents, attn_p, ff_p, final_g, final_b, *,
                     heads, dim_head, bt, shared_kv, apply_final_ln,
                     ln_eps, rms_eps, mxu_dtype, vmem_limit_bytes):
    B, N, dim = x.shape
    _, L, Dl = latents.shape
    H = ff_p["w1"].shape[1]

    const2 = lambda shape: pl.BlockSpec(shape, lambda b: (0, 0))
    const3 = lambda shape: pl.BlockSpec(shape, lambda b: (0, 0, 0))

    operands = [x, pos_rows, latents,
                attn_p["ln_x_g"], attn_p["ln_x_b"], attn_p["ln_l_g"], attn_p["ln_l_b"],
                attn_p["w_q"], attn_p["w_k_x"], attn_p["w_v_x"]]
    in_specs = [
        pl.BlockSpec((bt, N, dim), lambda b: (b, 0, 0)),        # x
        const2((N, dim)),                                       # pos rows
        pl.BlockSpec((bt, L, Dl), lambda b: (b, 0, 0)),         # latents
        const2((1, dim)), const2((1, dim)),                     # ln_x gamma/beta
        const2((1, Dl)), const2((1, Dl)),                       # ln_latents gamma/beta
        const3((heads, Dl, dim_head)),                          # W_q (per-head)
        const3((heads, dim, dim_head)),                         # W_k (x, per-head)
        const3((heads, dim, dim_head)),                         # W_v (x, per-head)
    ]
    if not shared_kv:
        operands += [attn_p["w_k_l"], attn_p["w_v_l"]]
        in_specs += [const3((heads, Dl, dim_head)), const3((heads, Dl, dim_head))]
    operands += [attn_p["rms_q_g"], attn_p["rms_k_g"], attn_p["w_out"], attn_p["b_out"],
                 ff_p["ln_g"], ff_p["ln_b"], ff_p["w1"], ff_p["b1"],
                 ff_p["w2"], ff_p["b2"], final_g, final_b]
    in_specs += [const2((1, dim_head)), const2((1, dim_head)),  # rms_q / rms_k gamma
                 const3((heads, dim_head, Dl)),                 # W_out (per-head rows)
                 const2((1, Dl)),                               # b_out
                 const2((1, Dl)), const2((1, Dl)),              # ff LN gamma/beta
                 const2((Dl, H)), const2((1, H)),               # W1, b1
                 const2((H, Dl)), const2((1, Dl)),              # W2, b2
                 const2((1, Dl)), const2((1, Dl))]              # final LN gamma/beta

    kernel = functools.partial(
        _layer_kernel, heads=heads, dim_head=dim_head,
        pos_scale=dim ** (-0.5), attn_scale=dim_head ** (-0.5),
        ln_eps=ln_eps, rms_eps=rms_eps,
        shared_kv=shared_kv, apply_final_ln=apply_final_ln, mxu_dtype=mxu_dtype)

    return pl.pallas_call(
        kernel,
        out_shape=jax.ShapeDtypeStruct((B, L, Dl), latents.dtype),
        grid_spec=pltpu.PrefetchScalarGridSpec(
            num_scalar_prefetch=0,
            grid=(B // bt,),
            in_specs=in_specs,
            out_specs=pl.BlockSpec((bt, L, Dl), lambda b: (b, 0, 0)),
        ),
        compiler_params=pltpu.CompilerParams(
            dimension_semantics=("parallel",),
            vmem_limit_bytes=vmem_limit_bytes),
    )(*operands)


# ---------------------------------------------------------------------------
# parameter preparation (bf16 weights, per-head splits, (1, D) row vectors)
# ---------------------------------------------------------------------------

def _prepare_params(params, *, heads, dim_head, mxu_dtype):
    inner = heads * dim_head
    f32 = jnp.float32
    row = lambda a: jnp.asarray(a).astype(f32).reshape(1, -1)

    def heads_major(w):  # (D_in, inner) -> (heads, D_in, dh)
        w = jnp.asarray(w).astype(f32)
        return jnp.transpose(w.reshape(w.shape[0], heads, dim_head),
                             (1, 0, 2)).astype(mxu_dtype)

    layers = []
    for lyr in params["layers"]:
        a, f = lyr["attn"], lyr["ff"]
        shared_kv = ("w_kv_l" not in a) or (a["w_kv_l"] is None) \
            or (a["w_kv_l"] is a["w_kv_x"])
        w_kv_x = jnp.asarray(a["w_kv_x"]).astype(f32)
        attn_p = {
            "ln_x_g": row(a["ln_x_g"]), "ln_x_b": row(a["ln_x_b"]),
            "ln_l_g": row(a["ln_l_g"]), "ln_l_b": row(a["ln_l_b"]),
            "w_q": heads_major(a["w_q"]),
            "w_k_x": heads_major(w_kv_x[:, :inner]),
            "w_v_x": heads_major(w_kv_x[:, inner:]),
            "rms_q_g": row(a["rms_q_g"]), "rms_k_g": row(a["rms_k_g"]),
            "w_out": jnp.asarray(a["w_out"]).astype(f32)
                        .reshape(heads, dim_head, -1).astype(mxu_dtype),
            "b_out": row(a["b_out"]),
        }
        if not shared_kv:
            w_kv_l = jnp.asarray(a["w_kv_l"]).astype(f32)
            attn_p["w_k_l"] = heads_major(w_kv_l[:, :inner])
            attn_p["w_v_l"] = heads_major(w_kv_l[:, inner:])
        ff_p = {
            "ln_g": row(f["ln_g"]), "ln_b": row(f["ln_b"]),
            "w1": jnp.asarray(f["w1"]).astype(mxu_dtype), "b1": row(f["b1"]),
            "w2": jnp.asarray(f["w2"]).astype(mxu_dtype), "b2": row(f["b2"]),
        }
        layers.append({"attn": attn_p, "ff": ff_p, "shared_kv": shared_kv})
    return {"layers": layers,
            "final_g": row(params["final_g"]), "final_b": row(params["final_b"])}


# ---------------------------------------------------------------------------
# full module forward (Pallas path)
# ---------------------------------------------------------------------------

def perceiver_resampler(x, params, *, heads, dim_head, mask=None,
                        mxu_dtype=jnp.bfloat16, ln_eps=1e-5, rms_eps=1e-8,
                        vmem_limit_bytes=48 * 1024 * 1024):
    assert mask is None  # TODO(synk): masked_fill attention path not implemented.
    B, N, dim = x.shape
    L, Dl = params["latents"].shape

    prep = _prepare_params(params, heads=heads, dim_head=dim_head, mxu_dtype=mxu_dtype)
    pos_rows = jnp.asarray(params["pos_emb"])[:N]               # scaled in-kernel
    latents = jnp.broadcast_to(
        jnp.asarray(params["latents"]).astype(x.dtype)[None], (B, L, Dl))

    n_layers = len(prep["layers"])
    if n_layers == 0:  # degenerate depth=0: plain-JAX final LayerNorm
        mu = latents.mean(-1, keepdims=True)
        var = ((latents - mu) ** 2).mean(-1, keepdims=True)
        return (latents - mu) * jax.lax.rsqrt(var + ln_eps) \
            * params["final_g"] + params["final_b"]

    bt = _pick_batch_tile(B, N, L)
    for li, lyr in enumerate(prep["layers"]):
        latents = _perceiver_layer(
            x, pos_rows, latents, lyr["attn"], lyr["ff"],
            prep["final_g"], prep["final_b"],
            heads=heads, dim_head=dim_head, bt=bt,
            shared_kv=lyr["shared_kv"], apply_final_ln=(li == n_layers - 1),
            ln_eps=ln_eps, rms_eps=rms_eps, mxu_dtype=mxu_dtype,
            vmem_limit_bytes=vmem_limit_bytes)
    # legacy=False -> output_proj is Identity; l2_normalize_latents=False.
    return latents


# ---------------------------------------------------------------------------
# Pure-JAX reference (faithful transcription of the PyTorch forward).
# matmul_dtype=None  -> exact f32 math.
# matmul_dtype=bf16  -> matmul operands rounded to bf16 at the same points the
#                       kernel feeds the MXU (quantization-matched reference).
# ---------------------------------------------------------------------------

def _reference_forward(x, params, *, heads, dim_head, ln_eps=1e-5, rms_eps=1e-8,
                       matmul_dtype=None):
    f32 = jnp.float32
    if matmul_dtype is None:
        cast = lambda t: t.astype(f32)
    else:
        cast = lambda t: t.astype(matmul_dtype).astype(f32)

    B, N, dim = x.shape
    L, Dl = params["latents"].shape
    inner = heads * dim_head

    def layer_norm(v, g, b):
        mu = v.mean(axis=-1, keepdims=True)
        var = ((v - mu) ** 2).mean(axis=-1, keepdims=True)
        return (v - mu) / jnp.sqrt(var + ln_eps) * g + b

    def rms_norm(v, g):
        norm = jnp.sqrt(jnp.sum(v * v, axis=-1, keepdims=True)) * (v.shape[-1] ** -0.5)
        return v / jnp.maximum(norm, rms_eps) * g

    pos = params["pos_emb"][:N] * (dim ** -0.5)
    xp = x.astype(f32) + pos[None]
    lat = jnp.broadcast_to(params["latents"][None].astype(f32), (B, L, Dl))

    for lyr in params["layers"]:
        a = lyr["attn"]
        w_kv_l = a.get("w_kv_l", None)
        if w_kv_l is None:
            w_kv_l = a["w_kv_x"]
        xn = layer_norm(xp, a["ln_x_g"], a["ln_x_b"])
        latn = layer_norm(lat, a["ln_l_g"], a["ln_l_b"])
        q = jnp.einsum("bnd,de->bne", cast(latn), cast(a["w_q"]),
                       preferred_element_type=f32)
        kv = jnp.concatenate(
            [jnp.einsum("bnd,de->bne", cast(xn), cast(a["w_kv_x"]),
                        preferred_element_type=f32),
             jnp.einsum("bnd,de->bne", cast(latn), cast(w_kv_l),
                        preferred_element_type=f32)], axis=1)
        k, v = kv[..., :inner], kv[..., inner:]

        def heads_first(t):
            return t.reshape(t.shape[0], t.shape[1], heads, dim_head
                             ).transpose(0, 2, 1, 3)

        qh, kh, vh = heads_first(q), heads_first(k), heads_first(v)
        qh = rms_norm(qh, a["rms_q_g"]) * (dim_head ** -0.5)
        kh = rms_norm(kh, a["rms_k_g"])
        sim = jnp.einsum("bhid,bhjd->bhij", cast(qh), cast(kh),
                         preferred_element_type=f32)
        attn = jax.nn.softmax(sim, axis=-1)
        o = jnp.einsum("bhij,bhjd->bhid", cast(attn), cast(vh),
                       preferred_element_type=f32)
        o = o.transpose(0, 2, 1, 3).reshape(B, L, inner)
        lat = jnp.einsum("bnd,de->bne", cast(o), cast(a["w_out"]),
                         preferred_element_type=f32) + a["b_out"] + lat

        f = lyr["ff"]
        hmid = jnp.einsum("bnd,dh->bnh",
                          cast(layer_norm(lat, f["ln_g"], f["ln_b"])), cast(f["w1"]),
                          preferred_element_type=f32) + f["b1"]
        lat = jnp.einsum("bnh,hd->bnd", cast(_gelu_tanh(hmid)), cast(f["w2"]),
                         preferred_element_type=f32) + f["b2"] + lat

    return layer_norm(lat, params["final_g"], params["final_b"])


# ---------------------------------------------------------------------------
# Demo / self-check
# ---------------------------------------------------------------------------

if __name__ == "__main__":
    key = jax.random.PRNGKey(0)

    # Small shapes consistent with the module defaults.
    B, N = 2, 8
    dim = 64
    dim_latent = 64            # == dim -> latent_to_kv is None (shared to_kv)
    dim_head = 32
    num_latents = 16
    max_seq_len = 64
    depth = 2
    ff_mult = 4

    inner = max(dim, dim_latent)
    heads = inner // dim_head
    hidden = dim_latent * ff_mult
    assert heads * dim_head == inner

    keys = iter(jax.random.split(key, 64))

    def nrm(shape, std=1.0):
        return std * jax.random.normal(next(keys), shape, dtype=jnp.float32)

    params = {
        "pos_emb": nrm((max_seq_len, dim)),
        "latents": nrm((num_latents, dim_latent), std=0.02),
        "final_g": 1.0 + 0.1 * nrm((dim_latent,)),
        "final_b": 0.05 * nrm((dim_latent,)),
        "layers": [],
    }
    for _ in range(depth):
        attn = {
            "ln_x_g": 1.0 + 0.1 * nrm((dim,)),
            "ln_x_b": 0.05 * nrm((dim,)),
            "ln_l_g": 1.0 + 0.1 * nrm((dim_latent,)),
            "ln_l_b": 0.05 * nrm((dim_latent,)),
            "w_q": nrm((dim_latent, inner), std=0.05),
            "w_kv_x": nrm((dim, 2 * inner), std=0.05),
            "rms_q_g": 1.0 + 0.1 * nrm((dim_head,)),
            "rms_k_g": 1.0 + 0.1 * nrm((dim_head,)),
            "w_out": nrm((inner, dim_latent), std=0.05),
            "b_out": 0.02 * nrm((dim_latent,)),
        }
        if dim_latent != dim:
            # module's latent_to_kv branch (not exercised at these demo dims)
            attn["w_kv_l"] = nrm((dim_latent, 2 * inner), std=0.05)
        ff = {
            "ln_g": 1.0 + 0.1 * nrm((dim_latent,)),
            "ln_b": 0.05 * nrm((dim_latent,)),
            "w1": nrm((dim_latent, hidden), std=0.05),
            "b1": 0.02 * nrm((hidden,)),
            "w2": nrm((hidden, dim_latent), std=0.05),
            "b2": 0.02 * nrm((dim_latent,)),
        }
        params["layers"].append({"attn": attn, "ff": ff})

    x = nrm((B, N, dim))

    out = jax.block_until_ready(
        perceiver_resampler(x, params, heads=heads, dim_head=dim_head))
    assert out.shape == (B, num_latents, dim_latent)
    assert bool(jnp.all(jnp.isfinite(out)))

    # bf16-matched reference: identical math, with matmul operands rounded to
    # bf16 at the same points the kernel feeds the MXU.  This isolates kernel
    # structure errors from the expected bf16 quantization drift (which the
    # LayerNorm stack amplifies at these tiny residual-stream magnitudes).
    ref = jax.block_until_ready(_reference_forward(
        x, params, heads=heads, dim_head=dim_head, matmul_dtype=jnp.bfloat16))
    max_err = float(jnp.max(jnp.abs(out - ref)))
    assert jnp.allclose(out, ref, atol=3e-2, rtol=3e-2), \
        f"mismatch vs bf16-matched reference (max abs err {max_err})"
    print("KERNEL_OK")
</pallas_src>

<mosaic_0001>
module attributes {stable_mosaic.version = 11 : i64} {
  func.func @_layer_kernel(%arg0: i32, %arg1: memref<1x8x64xf32, #tpu.memory_space<vmem>>, %arg2: memref<8x64xf32, #tpu.memory_space<vmem>>, %arg3: memref<1x16x64xf32, #tpu.memory_space<vmem>>, %arg4: memref<1x64xf32, #tpu.memory_space<vmem>>, %arg5: memref<1x64xf32, #tpu.memory_space<vmem>>, %arg6: memref<1x64xf32, #tpu.memory_space<vmem>>, %arg7: memref<1x64xf32, #tpu.memory_space<vmem>>, %arg8: memref<2x64x32xbf16, #tpu.memory_space<vmem>>, %arg9: memref<2x64x32xbf16, #tpu.memory_space<vmem>>, %arg10: memref<2x64x32xbf16, #tpu.memory_space<vmem>>, %arg11: memref<1x32xf32, #tpu.memory_space<vmem>>, %arg12: memref<1x32xf32, #tpu.memory_space<vmem>>, %arg13: memref<2x32x64xbf16, #tpu.memory_space<vmem>>, %arg14: memref<1x64xf32, #tpu.memory_space<vmem>>, %arg15: memref<1x64xf32, #tpu.memory_space<vmem>>, %arg16: memref<1x64xf32, #tpu.memory_space<vmem>>, %arg17: memref<64x256xbf16, #tpu.memory_space<vmem>>, %arg18: memref<1x256xf32, #tpu.memory_space<vmem>>, %arg19: memref<256x64xbf16, #tpu.memory_space<vmem>>, %arg20: memref<1x64xf32, #tpu.memory_space<vmem>>, %arg21: memref<1x64xf32, #tpu.memory_space<vmem>>, %arg22: memref<1x64xf32, #tpu.memory_space<vmem>>, %arg23: memref<1x16x64xf32, #tpu.memory_space<vmem>>) attributes {dimension_semantics = [#tpu.dimension_semantics<parallel>], iteration_bounds = array<i64: 2>, scalar_prefetch = 0 : i64, scratch_operands = 0 : i64, tpu.core_type = #tpu.core_type<tc>, window_params = [{transform_indices = @transform_0, window_bounds = array<i64: 1, 8, 64>}, {pipeline_mode = #tpu.pipeline_mode<synchronous>, transform_indices = @transform_1, window_bounds = array<i64: 8, 64>}, {transform_indices = @transform_2, window_bounds = array<i64: 1, 16, 64>}, {pipeline_mode = #tpu.pipeline_mode<synchronous>, transform_indices = @transform_3, window_bounds = array<i64: 1, 64>}, {pipeline_mode = #tpu.pipeline_mode<synchronous>, transform_indices = @transform_4, window_bounds = array<i64: 1, 64>}, {pipeline_mode = #tpu.pipeline_mode<synchronous>, transform_indices = @transform_5, window_bounds = array<i64: 1, 64>}, {pipeline_mode = #tpu.pipeline_mode<synchronous>, transform_indices = @transform_6, window_bounds = array<i64: 1, 64>}, {pipeline_mode = #tpu.pipeline_mode<synchronous>, transform_indices = @transform_7, window_bounds = array<i64: 2, 64, 32>}, {pipeline_mode = #tpu.pipeline_mode<synchronous>, transform_indices = @transform_8, window_bounds = array<i64: 2, 64, 32>}, {pipeline_mode = #tpu.pipeline_mode<synchronous>, transform_indices = @transform_9, window_bounds = array<i64: 2, 64, 32>}, {pipeline_mode = #tpu.pipeline_mode<synchronous>, transform_indices = @transform_10, window_bounds = array<i64: 1, 32>}, {pipeline_mode = #tpu.pipeline_mode<synchronous>, transform_indices = @transform_11, window_bounds = array<i64: 1, 32>}, {pipeline_mode = #tpu.pipeline_mode<synchronous>, transform_indices = @transform_12, window_bounds = array<i64: 2, 32, 64>}, {pipeline_mode = #tpu.pipeline_mode<synchronous>, transform_indices = @transform_13, window_bounds = array<i64: 1, 64>}, {pipeline_mode = #tpu.pipeline_mode<synchronous>, transform_indices = @transform_14, window_bounds = array<i64: 1, 64>}, {pipeline_mode = #tpu.pipeline_mode<synchronous>, transform_indices = @transform_15, window_bounds = array<i64: 1, 64>}, {pipeline_mode = #tpu.pipeline_mode<synchronous>, transform_indices = @transform_16, window_bounds = array<i64: 64, 256>}, {pipeline_mode = #tpu.pipeline_mode<synchronous>, transform_indices = @transform_17, window_bounds = array<i64: 1, 256>}, {pipeline_mode = #tpu.pipeline_mode<synchronous>, transform_indices = @transform_18, window_bounds = array<i64: 256, 64>}, {pipeline_mode = #tpu.pipeline_mode<synchronous>, transform_indices = @transform_19, window_bounds = array<i64: 1, 64>}, {pipeline_mode = #tpu.pipeline_mode<synchronous>, transform_indices = @transform_20, window_bounds = array<i64: 1, 64>}, {pipeline_mode = #tpu.pipeline_mode<synchronous>, transform_indices = @transform_21, window_bounds = array<i64: 1, 64>}, {transform_indices = @transform_22, window_bounds = array<i64: 1, 16, 64>}]} {
    %c0 = arith.constant 0 : index
    %c0_0 = arith.constant 0 : index
    %c0_1 = arith.constant 0 : index
    %0 = vector.load %arg1[%c0, %c0_0, %c0_1] : memref<1x8x64xf32, #tpu.memory_space<vmem>>, vector<1x8x64xf32>
    %c0_2 = arith.constant 0 : index
    %c0_3 = arith.constant 0 : index
    %1 = vector.load %arg2[%c0_2, %c0_3] : memref<8x64xf32, #tpu.memory_space<vmem>>, vector<8x64xf32>
    %2 = vector.shape_cast %1 : vector<8x64xf32> to vector<1x8x64xf32>
    %cst = arith.constant 1.250000e-01 : f32
    %3 = vector.broadcast %cst : f32 to vector<1x8x64xf32>
    %4 = arith.mulf %2, %3 : vector<1x8x64xf32>
    %5 = arith.addf %0, %4 : vector<1x8x64xf32>
    %c0_4 = arith.constant 0 : index
    %c0_5 = arith.constant 0 : index
    %c0_6 = arith.constant 0 : index
    %6 = vector.load %arg3[%c0_4, %c0_5, %c0_6] : memref<1x16x64xf32, #tpu.memory_space<vmem>>, vector<1x16x64xf32>
    %7 = vector.shape_cast %6 : vector<1x16x64xf32> to vector<16x64xf32>
    %8 = vector.shape_cast %5 : vector<1x8x64xf32> to vector<8x64xf32>
    %cst_7 = arith.constant dense<0.000000e+00> : vector<8xf32>
    %9 = vector.multi_reduction <add>, %8, %cst_7 [1] : vector<8x64xf32> to vector<8xf32>
    %10 = vector.shape_cast %9 : vector<8xf32> to vector<8x1xf32>
    %cst_8 = arith.constant 6.400000e+01 : f32
    %11 = vector.broadcast %cst_8 : f32 to vector<8x1xf32>
    %12 = arith.divf %10, %11 : vector<8x1xf32>
    %13 = vector.broadcast %12 : vector<8x1xf32> to vector<8x64xf32>
    %14 = arith.subf %8, %13 : vector<8x64xf32>
    %15 = arith.mulf %14, %14 : vector<8x64xf32>
    %cst_9 = arith.constant dense<0.000000e+00> : vector<8xf32>
    %16 = vector.multi_reduction <add>, %15, %cst_9 [1] : vector<8x64xf32> to vector<8xf32>
    %17 = vector.shape_cast %16 : vector<8xf32> to vector<8x1xf32>
    %cst_10 = arith.constant 6.400000e+01 : f32
    %18 = vector.broadcast %cst_10 : f32 to vector<8x1xf32>
    %19 = arith.divf %17, %18 : vector<8x1xf32>
    %20 = vector.broadcast %12 : vector<8x1xf32> to vector<8x64xf32>
    %21 = arith.subf %8, %20 : vector<8x64xf32>
    %cst_11 = arith.constant 9.99999974E-6 : f32
    %22 = vector.broadcast %cst_11 : f32 to vector<8x1xf32>
    %23 = arith.addf %19, %22 : vector<8x1xf32>
    %24 = math.rsqrt %23 : vector<8x1xf32>
    %25 = vector.broadcast %24 : vector<8x1xf32> to vector<8x64xf32>
    %26 = arith.mulf %21, %25 : vector<8x64xf32>
    %c0_12 = arith.constant 0 : index
    %c0_13 = arith.constant 0 : index
    %27 = vector.load %arg4[%c0_12, %c0_13] : memref<1x64xf32, #tpu.memory_space<vmem>>, vector<1x64xf32>
    %28 = vector.broadcast %27 : vector<1x64xf32> to vector<8x64xf32>
    %29 = arith.mulf %26, %28 : vector<8x64xf32>
    %c0_14 = arith.constant 0 : index
    %c0_15 = arith.constant 0 : index
    %30 = vector.load %arg5[%c0_14, %c0_15] : memref<1x64xf32, #tpu.memory_space<vmem>>, vector<1x64xf32>
    %31 = vector.broadcast %30 : vector<1x64xf32> to vector<8x64xf32>
    %32 = arith.addf %29, %31 : vector<8x64xf32>
    %cst_16 = arith.constant dense<0.000000e+00> : vector<16xf32>
    %33 = vector.multi_reduction <add>, %7, %cst_16 [1] : vector<16x64xf32> to vector<16xf32>
    %34 = vector.shape_cast %33 : vector<16xf32> to vector<16x1xf32>
    %cst_17 = arith.constant 6.400000e+01 : f32
    %35 = vector.broadcast %cst_17 : f32 to vector<16x1xf32>
    %36 = arith.divf %34, %35 : vector<16x1xf32>
    %37 = vector.broadcast %36 : vector<16x1xf32> to vector<16x64xf32>
    %38 = arith.subf %7, %37 : vector<16x64xf32>
    %39 = arith.mulf %38, %38 : vector<16x64xf32>
    %cst_18 = arith.constant dense<0.000000e+00> : vector<16xf32>
    %40 = vector.multi_reduction <add>, %39, %cst_18 [1] : vector<16x64xf32> to vector<16xf32>
    %41 = vector.shape_cast %40 : vector<16xf32> to vector<16x1xf32>
    %cst_19 = arith.constant 6.400000e+01 : f32
    %42 = vector.broadcast %cst_19 : f32 to vector<16x1xf32>
    %43 = arith.divf %41, %42 : vector<16x1xf32>
    %44 = vector.broadcast %36 : vector<16x1xf32> to vector<16x64xf32>
    %45 = arith.subf %7, %44 : vector<16x64xf32>
    %cst_20 = arith.constant 9.99999974E-6 : f32
    %46 = vector.broadcast %cst_20 : f32 to vector<16x1xf32>
    %47 = arith.addf %43, %46 : vector<16x1xf32>
    %48 = math.rsqrt %47 : vector<16x1xf32>
    %49 = vector.broadcast %48 : vector<16x1xf32> to vector<16x64xf32>
    %50 = arith.mulf %45, %49 : vector<16x64xf32>
    %c0_21 = arith.constant 0 : index
    %c0_22 = arith.constant 0 : index
    %51 = vector.load %arg6[%c0_21, %c0_22] : memref<1x64xf32, #tpu.memory_space<vmem>>, vector<1x64xf32>
    %52 = vector.broadcast %51 : vector<1x64xf32> to vector<16x64xf32>
    %53 = arith.mulf %50, %52 : vector<16x64xf32>
    %c0_23 = arith.constant 0 : index
    %c0_24 = arith.constant 0 : index
    %54 = vector.load %arg7[%c0_23, %c0_24] : memref<1x64xf32, #tpu.memory_space<vmem>>, vector<1x64xf32>
    %55 = vector.broadcast %54 : vector<1x64xf32> to vector<16x64xf32>
    %56 = arith.addf %53, %55 : vector<16x64xf32>
    %57 = arith.truncf %56 : vector<16x64xf32> to vector<16x64xbf16>
    %58 = vector.shape_cast %32 : vector<8x64xf32> to vector<1x8x64xf32>
    %59 = vector.shape_cast %56 : vector<16x64xf32> to vector<1x16x64xf32>
    %60 = tpu.concatenate %58, %59 in 1 : vector<1x8x64xf32>, vector<1x16x64xf32> -> vector<1x24x64xf32>
    %61 = vector.shape_cast %60 : vector<1x24x64xf32> to vector<24x64xf32>
    %62 = arith.truncf %61 : vector<24x64xf32> to vector<24x64xbf16>
    %c0_25 = arith.constant 0 : index
    %c0_26 = arith.constant 0 : index
    %63 = vector.load %arg14[%c0_25, %c0_26] : memref<1x64xf32, #tpu.memory_space<vmem>>, vector<1x64xf32>
    %64 = vector.broadcast %63 : vector<1x64xf32> to vector<16x64xf32>
    %65 = arith.addf %7, %64 : vector<16x64xf32>
    %c0_27 = arith.constant 0 : index
    %c0_28 = arith.constant 0 : index
    %c0_29 = arith.constant 0 : index
    %66 = vector.load %arg8[%c0_27, %c0_28, %c0_29] : memref<2x64x32xbf16, #tpu.memory_space<vmem>>, vector<1x64x32xbf16>
    %67 = vector.shape_cast %66 : vector<1x64x32xbf16> to vector<64x32xbf16>
    %cst_30 = arith.constant dense<0.000000e+00> : vector<16x32xf32>
    %68 = tpu.matmul %57, %67, %cst_30 {dimension_numbers = #tpu.dot_dimension_numbers<[1], [0], [0], [1], [0, 0, 1, 1], [], []>} : vector<16x64xbf16>, vector<64x32xbf16>, vector<16x32xf32> -> vector<16x32xf32>
    %c0_31 = arith.constant 0 : index
    %c0_32 = arith.constant 0 : index
    %c0_33 = arith.constant 0 : index
    %69 = vector.load %arg9[%c0_31, %c0_32, %c0_33] : memref<2x64x32xbf16, #tpu.memory_space<vmem>>, vector<1x64x32xbf16>
    %70 = vector.shape_cast %69 : vector<1x64x32xbf16> to vector<64x32xbf16>
    %cst_34 = arith.constant dense<0.000000e+00> : vector<24x32xf32>
    %71 = tpu.matmul %62, %70, %cst_34 {dimension_numbers = #tpu.dot_dimension_numbers<[1], [0], [0], [1], [0, 0, 1, 1], [], []>} : vector<24x64xbf16>, vector<64x32xbf16>, vector<24x32xf32> -> vector<24x32xf32>
    %c0_35 = arith.constant 0 : index
    %c0_36 = arith.constant 0 : index
    %c0_37 = arith.constant 0 : index
    %72 = vector.load %arg10[%c0_35, %c0_36, %c0_37] : memref<2x64x32xbf16, #tpu.memory_space<vmem>>, vector<1x64x32xbf16>
    %73 = vector.shape_cast %72 : vector<1x64x32xbf16> to vector<64x32xbf16>
    %cst_38 = arith.constant dense<0.000000e+00> : vector<24x32xf32>
    %74 = tpu.matmul %62, %73, %cst_38 {dimension_numbers = #tpu.dot_dimension_numbers<[1], [0], [0], [1], [0, 0, 1, 1], [], []>} : vector<24x64xbf16>, vector<64x32xbf16>, vector<24x32xf32> -> vector<24x32xf32>
    %75 = arith.mulf %68, %68 : vector<16x32xf32>
    %cst_39 = arith.constant dense<0.000000e+00> : vector<16xf32>
    %76 = vector.multi_reduction <add>, %75, %cst_39 [1] : vector<16x32xf32> to vector<16xf32>
    %77 = vector.shape_cast %76 : vector<16xf32> to vector<16x1xf32>
    %cst_40 = arith.constant 3.200000e+01 : f32
    %78 = vector.broadcast %cst_40 : f32 to vector<16x1xf32>
    %79 = arith.divf %77, %78 : vector<16x1xf32>
    %cst_41 = arith.constant 1.000000e-16 : f32
    %80 = vector.broadcast %cst_41 : f32 to vector<16x1xf32>
    %81 = arith.maximumf %79, %80 : vector<16x1xf32>
    %82 = math.rsqrt %81 : vector<16x1xf32>
    %83 = vector.broadcast %82 : vector<16x1xf32> to vector<16x32xf32>
    %84 = arith.mulf %68, %83 : vector<16x32xf32>
    %c0_42 = arith.constant 0 : index
    %c0_43 = arith.constant 0 : index
    %85 = vector.load %arg11[%c0_42, %c0_43] : memref<1x32xf32, #tpu.memory_space<vmem>>, vector<1x32xf32>
    %86 = vector.broadcast %85 : vector<1x32xf32> to vector<16x32xf32>
    %87 = arith.mulf %84, %86 : vector<16x32xf32>
    %cst_44 = arith.constant 0.176776692 : f32
    %88 = vector.broadcast %cst_44 : f32 to vector<16x32xf32>
    %89 = arith.mulf %87, %88 : vector<16x32xf32>
    %90 = arith.truncf %89 : vector<16x32xf32> to vector<16x32xbf16>
    %91 = vector.shape_cast %90 : vector<16x32xbf16> to vector<1x16x32xbf16>
    %92 = arith.mulf %71, %71 : vector<24x32xf32>
    %cst_45 = arith.constant dense<0.000000e+00> : vector<24xf32>
    %93 = vector.multi_reduction <add>, %92, %cst_45 [1] : vector<24x32xf32> to vector<24xf32>
    %94 = vector.shape_cast %93 : vector<24xf32> to vector<24x1xf32>
    %cst_46 = arith.constant 3.200000e+01 : f32
    %95 = vector.broadcast %cst_46 : f32 to vector<24x1xf32>
    %96 = arith.divf %94, %95 : vector<24x1xf32>
    %cst_47 = arith.constant 1.000000e-16 : f32
    %97 = vector.broadcast %cst_47 : f32 to vector<24x1xf32>
    %98 = arith.maximumf %96, %97 : vector<24x1xf32>
    %99 = math.rsqrt %98 : vector<24x1xf32>
    %100 = vector.broadcast %99 : vector<24x1xf32> to vector<24x32xf32>
    %101 = arith.mulf %71, %100 : vector<24x32xf32>
    %c0_48 = arith.constant 0 : index
    %c0_49 = arith.constant 0 : index
    %102 = vector.load %arg12[%c0_48, %c0_49] : memref<1x32xf32, #tpu.memory_space<vmem>>, vector<1x32xf32>
    %103 = vector.broadcast %102 : vector<1x32xf32> to vector<24x32xf32>
    %104 = arith.mulf %101, %103 : vector<24x32xf32>
    %105 = arith.truncf %104 : vector<24x32xf32> to vector<24x32xbf16>
    %106 = vector.shape_cast %105 : vector<24x32xbf16> to vector<1x24x32xbf16>
    %107 = arith.truncf %74 : vector<24x32xf32> to vector<24x32xbf16>
    %108 = vector.shape_cast %107 : vector<24x32xbf16> to vector<1x24x32xbf16>
    "tpu.trace_start"() <{level = 10 : i32, message = "bid,bjd->bij"}> : () -> ()
    %cst_50 = arith.constant dense<0.000000e+00> : vector<1x16x24xf32>
    %109 = tpu.matmul %91, %106, %cst_50 {dimension_numbers = #tpu.dot_dimension_numbers<[2], [2], [1], [1], [0, 0, 0, 1, 1, 1], [0], [0]>} : vector<1x16x32xbf16>, vector<1x24x32xbf16>, vector<1x16x24xf32> -> vector<1x16x24xf32>
    "tpu.trace_stop"() : () -> ()
    %cst_51 = arith.constant dense<0xFF800000> : vector<1x16xf32>
    %110 = vector.multi_reduction <maximumf>, %109, %cst_51 [2] : vector<1x16x24xf32> to vector<1x16xf32>
    %111 = vector.shape_cast %110 : vector<1x16xf32> to vector<1x16x1xf32>
    %112 = vector.broadcast %111 : vector<1x16x1xf32> to vector<1x16x24xf32>
    %113 = arith.subf %109, %112 : vector<1x16x24xf32>
    %114 = math.exp %113 : vector<1x16x24xf32>
    %cst_52 = arith.constant dense<0.000000e+00> : vector<1x16xf32>
    %115 = vector.multi_reduction <add>, %114, %cst_52 [2] : vector<1x16x24xf32> to vector<1x16xf32>
    %116 = vector.shape_cast %115 : vector<1x16xf32> to vector<1x16x1xf32>
    %117 = tpu.reciprocal %116 {approx = true} : vector<1x16x1xf32> -> vector<1x16x1xf32>
    %118 = vector.broadcast %117 : vector<1x16x1xf32> to vector<1x16x24xf32>
    %119 = arith.mulf %114, %118 : vector<1x16x24xf32>
    %120 = arith.truncf %119 : vector<1x16x24xf32> to vector<1x16x24xbf16>
    "tpu.trace_start"() <{level = 10 : i32, message = "bij,bjd->bid"}> : () -> ()
    %cst_53 = arith.constant dense<0.000000e+00> : vector<1x16x32xf32>
    %121 = tpu.matmul %120, %108, %cst_53 {dimension_numbers = #tpu.dot_dimension_numbers<[2], [1], [1], [2], [0, 0, 0, 1, 1, 2], [0], [0]>} : vector<1x16x24xbf16>, vector<1x24x32xbf16>, vector<1x16x32xf32> -> vector<1x16x32xf32>
    "tpu.trace_stop"() : () -> ()
    %122 = vector.shape_cast %121 : vector<1x16x32xf32> to vector<16x32xf32>
    %123 = arith.truncf %122 : vector<16x32xf32> to vector<16x32xbf16>
    %c0_54 = arith.constant 0 : index
    %c0_55 = arith.constant 0 : index
    %c0_56 = arith.constant 0 : index
    %124 = vector.load %arg13[%c0_54, %c0_55, %c0_56] : memref<2x32x64xbf16, #tpu.memory_space<vmem>>, vector<1x32x64xbf16>
    %125 = vector.shape_cast %124 : vector<1x32x64xbf16> to vector<32x64xbf16>
    %cst_57 = arith.constant dense<0.000000e+00> : vector<16x64xf32>
    %126 = tpu.matmul %123, %125, %cst_57 {dimension_numbers = #tpu.dot_dimension_numbers<[1], [0], [0], [1], [0, 0, 1, 1], [], []>} : vector<16x32xbf16>, vector<32x64xbf16>, vector<16x64xf32> -> vector<16x64xf32>
    %127 = arith.addf %65, %126 : vector<16x64xf32>
    %c1 = arith.constant 1 : index
    %c0_58 = arith.constant 0 : index
    %c0_59 = arith.constant 0 : index
    %128 = vector.load %arg8[%c1, %c0_58, %c0_59] : memref<2x64x32xbf16, #tpu.memory_space<vmem>>, vector<1x64x32xbf16>
    %129 = vector.shape_cast %128 : vector<1x64x32xbf16> to vector<64x32xbf16>
    %cst_60 = arith.constant dense<0.000000e+00> : vector<16x32xf32>
    %130 = tpu.matmul %57, %129, %cst_60 {dimension_numbers = #tpu.dot_dimension_numbers<[1], [0], [0], [1], [0, 0, 1, 1], [], []>} : vector<16x64xbf16>, vector<64x32xbf16>, vector<16x32xf32> -> vector<16x32xf32>
    %c1_61 = arith.constant 1 : index
    %c0_62 = arith.constant 0 : index
    %c0_63 = arith.constant 0 : index
    %131 = vector.load %arg9[%c1_61, %c0_62, %c0_63] : memref<2x64x32xbf16, #tpu.memory_space<vmem>>, vector<1x64x32xbf16>
    %132 = vector.shape_cast %131 : vector<1x64x32xbf16> to vector<64x32xbf16>
    %cst_64 = arith.constant dense<0.000000e+00> : vector<24x32xf32>
    %133 = tpu.matmul %62, %132, %cst_64 {dimension_numbers = #tpu.dot_dimension_numbers<[1], [0], [0], [1], [0, 0, 1, 1], [], []>} : vector<24x64xbf16>, vector<64x32xbf16>, vector<24x32xf32> -> vector<24x32xf32>
    %c1_65 = arith.constant 1 : index
    %c0_66 = arith.constant 0 : index
    %c0_67 = arith.constant 0 : index
    %134 = vector.load %arg10[%c1_65, %c0_66, %c0_67] : memref<2x64x32xbf16, #tpu.memory_space<vmem>>, vector<1x64x32xbf16>
    %135 = vector.shape_cast %134 : vector<1x64x32xbf16> to vector<64x32xbf16>
    %cst_68 = arith.constant dense<0.000000e+00> : vector<24x32xf32>
    %136 = tpu.matmul %62, %135, %cst_68 {dimension_numbers = #tpu.dot_dimension_numbers<[1], [0], [0], [1], [0, 0, 1, 1], [], []>} : vector<24x64xbf16>, vector<64x32xbf16>, vector<24x32xf32> -> vector<24x32xf32>
    %137 = arith.mulf %130, %130 : vector<16x32xf32>
    %cst_69 = arith.constant dense<0.000000e+00> : vector<16xf32>
    %138 = vector.multi_reduction <add>, %137, %cst_69 [1] : vector<16x32xf32> to vector<16xf32>
    %139 = vector.shape_cast %138 : vector<16xf32> to vector<16x1xf32>
    %cst_70 = arith.constant 3.200000e+01 : f32
    %140 = vector.broadcast %cst_70 : f32 to vector<16x1xf32>
    %141 = arith.divf %139, %140 : vector<16x1xf32>
    %cst_71 = arith.constant 1.000000e-16 : f32
    %142 = vector.broadcast %cst_71 : f32 to vector<16x1xf32>
    %143 = arith.maximumf %141, %142 : vector<16x1xf32>
    %144 = math.rsqrt %143 : vector<16x1xf32>
    %145 = vector.broadcast %144 : vector<16x1xf32> to vector<16x32xf32>
    %146 = arith.mulf %130, %145 : vector<16x32xf32>
    %c0_72 = arith.constant 0 : index
    %c0_73 = arith.constant 0 : index
    %147 = vector.load %arg11[%c0_72, %c0_73] : memref<1x32xf32, #tpu.memory_space<vmem>>, vector<1x32xf32>
    %148 = vector.broadcast %147 : vector<1x32xf32> to vector<16x32xf32>
    %149 = arith.mulf %146, %148 : vector<16x32xf32>
    %cst_74 = arith.constant 0.176776692 : f32
    %150 = vector.broadcast %cst_74 : f32 to vector<16x32xf32>
    %151 = arith.mulf %149, %150 : vector<16x32xf32>
    %152 = arith.truncf %151 : vector<16x32xf32> to vector<16x32xbf16>
    %153 = vector.shape_cast %152 : vector<16x32xbf16> to vector<1x16x32xbf16>
    %154 = arith.mulf %133, %133 : vector<24x32xf32>
    %cst_75 = arith.constant dense<0.000000e+00> : vector<24xf32>
    %155 = vector.multi_reduction <add>, %154, %cst_75 [1] : vector<24x32xf32> to vector<24xf32>
    %156 = vector.shape_cast %155 : vector<24xf32> to vector<24x1xf32>
    %cst_76 = arith.constant 3.200000e+01 : f32
    %157 = vector.broadcast %cst_76 : f32 to vector<24x1xf32>
    %158 = arith.divf %156, %157 : vector<24x1xf32>
    %cst_77 = arith.constant 1.000000e-16 : f32
    %159 = vector.broadcast %cst_77 : f32 to vector<24x1xf32>
    %160 = arith.maximumf %158, %159 : vector<24x1xf32>
    %161 = math.rsqrt %160 : vector<24x1xf32>
    %162 = vector.broadcast %161 : vector<24x1xf32> to vector<24x32xf32>
    %163 = arith.mulf %133, %162 : vector<24x32xf32>
    %c0_78 = arith.constant 0 : index
    %c0_79 = arith.constant 0 : index
    %164 = vector.load %arg12[%c0_78, %c0_79] : memref<1x32xf32, #tpu.memory_space<vmem>>, vector<1x32xf32>
    %165 = vector.broadcast %164 : vector<1x32xf32> to vector<24x32xf32>
    %166 = arith.mulf %163, %165 : vector<24x32xf32>
    %167 = arith.truncf %166 : vector<24x32xf32> to vector<24x32xbf16>
    %168 = vector.shape_cast %167 : vector<24x32xbf16> to vector<1x24x32xbf16>
    %169 = arith.truncf %136 : vector<24x32xf32> to vector<24x32xbf16>
    %170 = vector.shape_cast %169 : vector<24x32xbf16> to vector<1x24x32xbf16>
    "tpu.trace_start"() <{level = 10 : i32, message = "bid,bjd->bij"}> : () -> ()
    %cst_80 = arith.constant dense<0.000000e+00> : vector<1x16x24xf32>
    %171 = tpu.matmul %153, %168, %cst_80 {dimension_numbers = #tpu.dot_dimension_numbers<[2], [2], [1], [1], [0, 0, 0, 1, 1, 1], [0], [0]>} : vector<1x16x32xbf16>, vector<1x24x32xbf16>, vector<1x16x24xf32> -> vector<1x16x24xf32>
    "tpu.trace_stop"() : () -> ()
    %cst_81 = arith.constant dense<0xFF800000> : vector<1x16xf32>
    %172 = vector.multi_reduction <maximumf>, %171, %cst_81 [2] : vector<1x16x24xf32> to vector<1x16xf32>
    %173 = vector.shape_cast %172 : vector<1x16xf32> to vector<1x16x1xf32>
    %174 = vector.broadcast %173 : vector<1x16x1xf32> to vector<1x16x24xf32>
    %175 = arith.subf %171, %174 : vector<1x16x24xf32>
    %176 = math.exp %175 : vector<1x16x24xf32>
    %cst_82 = arith.constant dense<0.000000e+00> : vector<1x16xf32>
    %177 = vector.multi_reduction <add>, %176, %cst_82 [2] : vector<1x16x24xf32> to vector<1x16xf32>
    %178 = vector.shape_cast %177 : vector<1x16xf32> to vector<1x16x1xf32>
    %179 = tpu.reciprocal %178 {approx = true} : vector<1x16x1xf32> -> vector<1x16x1xf32>
    %180 = vector.broadcast %179 : vector<1x16x1xf32> to vector<1x16x24xf32>
    %181 = arith.mulf %176, %180 : vector<1x16x24xf32>
    %182 = arith.truncf %181 : vector<1x16x24xf32> to vector<1x16x24xbf16>
    "tpu.trace_start"() <{level = 10 : i32, message = "bij,bjd->bid"}> : () -> ()
    %cst_83 = arith.constant dense<0.000000e+00> : vector<1x16x32xf32>
    %183 = tpu.matmul %182, %170, %cst_83 {dimension_numbers = #tpu.dot_dimension_numbers<[2], [1], [1], [2], [0, 0, 0, 1, 1, 2], [0], [0]>} : vector<1x16x24xbf16>, vector<1x24x32xbf16>, vector<1x16x32xf32> -> vector<1x16x32xf32>
    "tpu.trace_stop"() : () -> ()
    %184 = vector.shape_cast %183 : vector<1x16x32xf32> to vector<16x32xf32>
    %185 = arith.truncf %184 : vector<16x32xf32> to vector<16x32xbf16>
    %c1_84 = arith.constant 1 : index
    %c0_85 = arith.constant 0 : index
    %c0_86 = arith.constant 0 : index
    %186 = vector.load %arg13[%c1_84, %c0_85, %c0_86] : memref<2x32x64xbf16, #tpu.memory_space<vmem>>, vector<1x32x64xbf16>
    %187 = vector.shape_cast %186 : vector<1x32x64xbf16> to vector<32x64xbf16>
    %cst_87 = arith.constant dense<0.000000e+00> : vector<16x64xf32>
    %188 = tpu.matmul %185, %187, %cst_87 {dimension_numbers = #tpu.dot_dimension_numbers<[1], [0], [0], [1], [0, 0, 1, 1], [], []>} : vector<16x32xbf16>, vector<32x64xbf16>, vector<16x64xf32> -> vector<16x64xf32>
    %189 = arith.addf %127, %188 : vector<16x64xf32>
    %cst_88 = arith.constant dense<0.000000e+00> : vector<16xf32>
    %190 = vector.multi_reduction <add>, %189, %cst_88 [1] : vector<16x64xf32> to vector<16xf32>
    %191 = vector.shape_cast %190 : vector<16xf32> to vector<16x1xf32>
    %cst_89 = arith.constant 6.400000e+01 : f32
    %192 = vector.broadcast %cst_89 : f32 to vector<16x1xf32>
    %193 = arith.divf %191, %192 : vector<16x1xf32>
    %194 = vector.broadcast %193 : vector<16x1xf32> to vector<16x64xf32>
    %195 = arith.subf %189, %194 : vector<16x64xf32>
    %196 = arith.mulf %195, %195 : vector<16x64xf32>
    %cst_90 = arith.constant dense<0.000000e+00> : vector<16xf32>
    %197 = vector.multi_reduction <add>, %196, %cst_90 [1] : vector<16x64xf32> to vector<16xf32>
    %198 = vector.shape_cast %197 : vector<16xf32> to vector<16x1xf32>
    %cst_91 = arith.constant 6.400000e+01 : f32
    %199 = vector.broadcast %cst_91 : f32 to vector<16x1xf32>
    %200 = arith.divf %198, %199 : vector<16x1xf32>
    %201 = vector.broadcast %193 : vector<16x1xf32> to vector<16x64xf32>
    %202 = arith.subf %189, %201 : vector<16x64xf32>
    %cst_92 = arith.constant 9.99999974E-6 : f32
    %203 = vector.broadcast %cst_92 : f32 to vector<16x1xf32>
    %204 = arith.addf %200, %203 : vector<16x1xf32>
    %205 = math.rsqrt %204 : vector<16x1xf32>
    %206 = vector.broadcast %205 : vector<16x1xf32> to vector<16x64xf32>
    %207 = arith.mulf %202, %206 : vector<16x64xf32>
    %c0_93 = arith.constant 0 : index
    %c0_94 = arith.constant 0 : index
    %208 = vector.load %arg15[%c0_93, %c0_94] : memref<1x64xf32, #tpu.memory_space<vmem>>, vector<1x64xf32>
    %209 = vector.broadcast %208 : vector<1x64xf32> to vector<16x64xf32>
    %210 = arith.mulf %207, %209 : vector<16x64xf32>
    %c0_95 = arith.constant 0 : index
    %c0_96 = arith.constant 0 : index
    %211 = vector.load %arg16[%c0_95, %c0_96] : memref<1x64xf32, #tpu.memory_space<vmem>>, vector<1x64xf32>
    %212 = vector.broadcast %211 : vector<1x64xf32> to vector<16x64xf32>
    %213 = arith.addf %210, %212 : vector<16x64xf32>
    %214 = arith.truncf %213 : vector<16x64xf32> to vector<16x64xbf16>
    %c0_97 = arith.constant 0 : index
    %c0_98 = arith.constant 0 : index
    %215 = vector.load %arg17[%c0_97, %c0_98] : memref<64x256xbf16, #tpu.memory_space<vmem>>, vector<64x256xbf16>
    %cst_99 = arith.constant dense<0.000000e+00> : vector<16x256xf32>
    %216 = tpu.matmul %214, %215, %cst_99 {dimension_numbers = #tpu.dot_dimension_numbers<[1], [0], [0], [1], [0, 0, 1, 1], [], []>} : vector<16x64xbf16>, vector<64x256xbf16>, vector<16x256xf32> -> vector<16x256xf32>
    %c0_100 = arith.constant 0 : index
    %c0_101 = arith.constant 0 : index
    %217 = vector.load %arg18[%c0_100, %c0_101] : memref<1x256xf32, #tpu.memory_space<vmem>>, vector<1x256xf32>
    %218 = vector.broadcast %217 : vector<1x256xf32> to vector<16x256xf32>
    %219 = arith.addf %216, %218 : vector<16x256xf32>
    %cst_102 = arith.constant 5.000000e-01 : f32
    %220 = vector.broadcast %cst_102 : f32 to vector<16x256xf32>
    %221 = arith.mulf %220, %219 : vector<16x256xf32>
    %cst_103 = arith.constant 4.471500e-02 : f32
    %222 = vector.broadcast %cst_103 : f32 to vector<16x256xf32>
    %223 = arith.mulf %222, %219 : vector<16x256xf32>
    %224 = arith.mulf %223, %219 : vector<16x256xf32>
    %225 = arith.mulf %224, %219 : vector<16x256xf32>
    %226 = arith.addf %219, %225 : vector<16x256xf32>
    %cst_104 = arith.constant 0.797884583 : f32
    %227 = vector.broadcast %cst_104 : f32 to vector<16x256xf32>
    %228 = arith.mulf %227, %226 : vector<16x256xf32>
    %229 = math.tanh %228 : vector<16x256xf32>
    %cst_105 = arith.constant 1.000000e+00 : f32
    %230 = vector.broadcast %cst_105 : f32 to vector<16x256xf32>
    %231 = arith.addf %230, %229 : vector<16x256xf32>
    %232 = arith.mulf %221, %231 : vector<16x256xf32>
    %233 = arith.truncf %232 : vector<16x256xf32> to vector<16x256xbf16>
    %c0_106 = arith.constant 0 : index
    %c0_107 = arith.constant 0 : index
    %234 = vector.load %arg19[%c0_106, %c0_107] : memref<256x64xbf16, #tpu.memory_space<vmem>>, vector<256x64xbf16>
    %cst_108 = arith.constant dense<0.000000e+00> : vector<16x64xf32>
    %235 = tpu.matmul %233, %234, %cst_108 {dimension_numbers = #tpu.dot_dimension_numbers<[1], [0], [0], [1], [0, 0, 1, 1], [], []>} : vector<16x256xbf16>, vector<256x64xbf16>, vector<16x64xf32> -> vector<16x64xf32>
    %c0_109 = arith.constant 0 : index
    %c0_110 = arith.constant 0 : index
    %236 = vector.load %arg20[%c0_109, %c0_110] : memref<1x64xf32, #tpu.memory_space<vmem>>, vector<1x64xf32>
    %237 = vector.broadcast %236 : vector<1x64xf32> to vector<16x64xf32>
    %238 = arith.addf %235, %237 : vector<16x64xf32>
    %239 = arith.addf %189, %238 : vector<16x64xf32>
    %240 = vector.shape_cast %239 : vector<16x64xf32> to vector<1x16x64xf32>
    %c0_111 = arith.constant 0 : index
    %c0_112 = arith.constant 0 : index
    %c0_113 = arith.constant 0 : index
    %241 = vector.load %arg23[%c0_111, %c0_112, %c0_113] : memref<1x16x64xf32, #tpu.memory_space<vmem>>, vector<1x16x64xf32>
    tpu.vector_store %arg23[%c0_111, %c0_112, %c0_113], %240 {strides = array<i32>} : memref<1x16x64xf32, #tpu.memory_space<vmem>>, vector<1x16x64xf32>,
    return
  }
  func.func @transform_0(%arg0: i32) -> (i32, i32, i32) {
    %c0_i32 = arith.constant 0 : i32
    %c0_i32_0 = arith.constant 0 : i32
    %c0_i32_1 = arith.constant 0 : i32
    return %arg0, %c0_i32, %c0_i32_0 : i32, i32, i32
  }
  func.func @transform_1(%arg0: i32) -> (i32, i32) {
    %c0_i32 = arith.constant 0 : i32
    %c0_i32_0 = arith.constant 0 : i32
    %c0_i32_1 = arith.constant 0 : i32
    return %c0_i32, %c0_i32_0 : i32, i32
  }
  func.func @transform_2(%arg0: i32) -> (i32, i32, i32) {
    %c0_i32 = arith.constant 0 : i32
    %c0_i32_0 = arith.constant 0 : i32
    %c0_i32_1 = arith.constant 0 : i32
    return %arg0, %c0_i32, %c0_i32_0 : i32, i32, i32
  }
  func.func @transform_3(%arg0: i32) -> (i32, i32) {
    %c0_i32 = arith.constant 0 : i32
    %c0_i32_0 = arith.constant 0 : i32
    %c0_i32_1 = arith.constant 0 : i32
    return %c0_i32, %c0_i32_0 : i32, i32
  }
  func.func @transform_4(%arg0: i32) -> (i32, i32) {
    %c0_i32 = arith.constant 0 : i32
    %c0_i32_0 = arith.constant 0 : i32
    %c0_i32_1 = arith.constant 0 : i32
    return %c0_i32, %c0_i32_0 : i32, i32
  }
  func.func @transform_5(%arg0: i32) -> (i32, i32) {
    %c0_i32 = arith.constant 0 : i32
    %c0_i32_0 = arith.constant 0 : i32
    %c0_i32_1 = arith.constant 0 : i32
    return %c0_i32, %c0_i32_0 : i32, i32
  }
  func.func @transform_6(%arg0: i32) -> (i32, i32) {
    %c0_i32 = arith.constant 0 : i32
    %c0_i32_0 = arith.constant 0 : i32
    %c0_i32_1 = arith.constant 0 : i32
    return %c0_i32, %c0_i32_0 : i32, i32
  }
  func.func @transform_7(%arg0: i32) -> (i32, i32, i32) {
    %c0_i32 = arith.constant 0 : i32
    %c0_i32_0 = arith.constant 0 : i32
    %c0_i32_1 = arith.constant 0 : i32
    %c0_i32_2 = arith.constant 0 : i32
    return %c0_i32, %c0_i32_0, %c0_i32_1 : i32, i32, i32
  }
  func.func @transform_8(%arg0: i32) -> (i32, i32, i32) {
    %c0_i32 = arith.constant 0 : i32
    %c0_i32_0 = arith.constant 0 : i32
    %c0_i32_1 = arith.constant 0 : i32
    %c0_i32_2 = arith.constant 0 : i32
    return %c0_i32, %c0_i32_0, %c0_i32_1 : i32, i32, i32
  }
  func.func @transform_9(%arg0: i32) -> (i32, i32, i32) {
    %c0_i32 = arith.constant 0 : i32
    %c0_i32_0 = arith.constant 0 : i32
    %c0_i32_1 = arith.constant 0 : i32
    %c0_i32_2 = arith.constant 0 : i32
    return %c0_i32, %c0_i32_0, %c0_i32_1 : i32, i32, i32
  }
  func.func @transform_10(%arg0: i32) -> (i32, i32) {
    %c0_i32 = arith.constant 0 : i32
    %c0_i32_0 = arith.constant 0 : i32
    %c0_i32_1 = arith.constant 0 : i32
    return %c0_i32, %c0_i32_0 : i32, i32
  }
  func.func @transform_11(%arg0: i32) -> (i32, i32) {
    %c0_i32 = arith.constant 0 : i32
    %c0_i32_0 = arith.constant 0 : i32
    %c0_i32_1 = arith.constant 0 : i32
    return %c0_i32, %c0_i32_0 : i32, i32
  }
  func.func @transform_12(%arg0: i32) -> (i32, i32, i32) {
    %c0_i32 = arith.constant 0 : i32
    %c0_i32_0 = arith.constant 0 : i32
    %c0_i32_1 = arith.constant 0 : i32
    %c0_i32_2 = arith.constant 0 : i32
    return %c0_i32, %c0_i32_0, %c0_i32_1 : i32, i32, i32
  }
  func.func @transform_13(%arg0: i32) -> (i32, i32) {
    %c0_i32 = arith.constant 0 : i32
    %c0_i32_0 = arith.constant 0 : i32
    %c0_i32_1 = arith.constant 0 : i32
    return %c0_i32, %c0_i32_0 : i32, i32
  }
  func.func @transform_14(%arg0: i32) -> (i32, i32) {
    %c0_i32 = arith.constant 0 : i32
    %c0_i32_0 = arith.constant 0 : i32
    %c0_i32_1 = arith.constant 0 : i32
    return %c0_i32, %c0_i32_0 : i32, i32
  }
  func.func @transform_15(%arg0: i32) -> (i32, i32) {
    %c0_i32 = arith.constant 0 : i32
    %c0_i32_0 = arith.constant 0 : i32
    %c0_i32_1 = arith.constant 0 : i32
    return %c0_i32, %c0_i32_0 : i32, i32
  }
  func.func @transform_16(%arg0: i32) -> (i32, i32) {
    %c0_i32 = arith.constant 0 : i32
    %c0_i32_0 = arith.constant 0 : i32
    %c0_i32_1 = arith.constant 0 : i32
    return %c0_i32, %c0_i32_0 : i32, i32
  }
  func.func @transform_17(%arg0: i32) -> (i32, i32) {
    %c0_i32 = arith.constant 0 : i32
    %c0_i32_0 = arith.constant 0 : i32
    %c0_i32_1 = arith.constant 0 : i32
    return %c0_i32, %c0_i32_0 : i32, i32
  }
  func.func @transform_18(%arg0: i32) -> (i32, i32) {
    %c0_i32 = arith.constant 0 : i32
    %c0_i32_0 = arith.constant 0 : i32
    %c0_i32_1 = arith.constant 0 : i32
    return %c0_i32, %c0_i32_0 : i32, i32
  }
  func.func @transform_19(%arg0: i32) -> (i32, i32) {
    %c0_i32 = arith.constant 0 : i32
    %c0_i32_0 = arith.constant 0 : i32
    %c0_i32_1 = arith.constant 0 : i32
    return %c0_i32, %c0_i32_0 : i32, i32
  }
  func.func @transform_20(%arg0: i32) -> (i32, i32) {
    %c0_i32 = arith.constant 0 : i32
    %c0_i32_0 = arith.constant 0 : i32
    %c0_i32_1 = arith.constant 0 : i32
    return %c0_i32, %c0_i32_0 : i32, i32
  }
  func.func @transform_21(%arg0: i32) -> (i32, i32) {
    %c0_i32 = arith.constant 0 : i32
    %c0_i32_0 = arith.constant 0 : i32
    %c0_i32_1 = arith.constant 0 : i32
    return %c0_i32, %c0_i32_0 : i32, i32
  }
  func.func @transform_22(%arg0: i32) -> (i32, i32, i32) {
    %c0_i32 = arith.constant 0 : i32
    %c0_i32_0 = arith.constant 0 : i32
    %c0_i32_1 = arith.constant 0 : i32
    return %arg0, %c0_i32, %c0_i32_0 : i32, i32, i32
  }
}

</mosaic_0001>

<llo_original>
// kernel: tpu_custom_call.1
$region0: #{tpu_custom_call.1}
  #allocation0 [shape = 'u32[]', space=smem, size = 0x4, offset = 0x4, fixed_abs, tag = 'smem constant byte address 0x4 - core index']
  #allocation1 [shape = 'u32[144,128]{1,0:T(1,128)}', space=vmem, size = 0x12000, scoped, tag = 'internal scratch']
  %s0 = inlined_call_operand.vmem [shape: f32[2,8,64], index: 0, kind: input, shape index: {}]
  %s1 = inlined_call_operand.vmem [shape: f32[8,64], index: 1, kind: input, shape index: {}]
  %s2 = inlined_call_operand.vmem [shape: f32[2,16,64], index: 2, kind: input, shape index: {}]
  %s3 = inlined_call_operand.vmem [shape: f32[1,64], index: 3, kind: input, shape index: {}]
  %s4 = inlined_call_operand.vmem [shape: f32[1,64], index: 4, kind: input, shape index: {}]
  %s5 = inlined_call_operand.vmem [shape: f32[1,64], index: 5, kind: input, shape index: {}]
  %s6 = inlined_call_operand.vmem [shape: f32[1,64], index: 6, kind: input, shape index: {}]
  %s7 = inlined_call_operand.vmem [shape: bf16[2,64,32], index: 7, kind: input, shape index: {}]
  %s8 = inlined_call_operand.vmem [shape: bf16[2,64,32], index: 8, kind: input, shape index: {}]
  %s9 = inlined_call_operand.vmem [shape: bf16[2,64,32], index: 9, kind: input, shape index: {}]
  %s10 = inlined_call_operand.vmem [shape: f32[1,32], index: 10, kind: input, shape index: {}]
  %s11 = inlined_call_operand.vmem [shape: f32[1,32], index: 11, kind: input, shape index: {}]
  %s12 = inlined_call_operand.vmem [shape: bf16[2,32,64], index: 12, kind: input, shape index: {}]
  %s13 = inlined_call_operand.vmem [shape: f32[1,64], index: 13, kind: input, shape index: {}]
  %s14 = inlined_call_operand.vmem [shape: f32[1,64], index: 14, kind: input, shape index: {}]
  %s15 = inlined_call_operand.vmem [shape: f32[1,64], index: 15, kind: input, shape index: {}]
  %s16 = inlined_call_operand.vmem [shape: bf16[64,256], index: 16, kind: input, shape index: {}]
  %s17 = inlined_call_operand.vmem [shape: f32[1,256], index: 17, kind: input, shape index: {}]
  %s18 = inlined_call_operand.vmem [shape: bf16[256,64], index: 18, kind: input, shape index: {}]
  %s19 = inlined_call_operand.vmem [shape: f32[1,64], index: 19, kind: input, shape index: {}]
  %s20 = inlined_call_operand.vmem [shape: f32[1,64], index: 20, kind: input, shape index: {}]
  %s21 = inlined_call_operand.vmem [shape: f32[1,64], index: 21, kind: input, shape index: {}]
  %s22 = inlined_call_operand.hbm [shape: f32[2,16,64], index: 22, kind: output, shape index: {}]
  %s23 = sld [smem:[#allocation0]]
  $region121: #{tpu_custom_call.1} parent=0
    _
  %s25 = ssub.s32 1, %s23
  %s26 = scalar_select 0, %s25, %s23
  $region1: #{tpu_custom_call.1} parent=0
    #allocation2 [shape = 'u8[16384]{0}', space=vmem, size = 0x4000, scoped, tag = 'output window, operand 0']
    #allocation3 [shape = 's32[2]{0}', space=sflag, size = 0x8, scoped, tag = 'scoped memory for tpu_custom_call.1']
    %27 = vsyncpa [#allocation3], 0
    %s28 = scalar_lea.sflag [#allocation3], 1
    %29 = vsyncpa %s28, 0
    loop: start=0, step=1, limit=4
    $region2: #{tpu_custom_call.1} parent=1 // loop_pre_header
      _
    $region3: #{tpu_custom_call.1} parent=1 // loop_header
      %s31 = sphi 0, %s35
      %p32 = scmp.ge.s32.totalorder %s31, 4
      %s41 = sphi 0, %s43
      %s44 = sphi 0, %s41
      %s45 = sphi 0, %s44
      %s61 = sphi 0, %s45
      %s65 = sphi 0, %s65
      %s67 = sphi 0, %s65
      %s68 = sphi 0, %s67
      %s82 = sphi 0, %s68
      %s88 = sphi 0, %s90
      %s91 = sphi 0, %s88
      %s92 = sphi 0, %s91
      %s108 = sphi 0, %s92
      %s112 = sphi 0, %s112
      %s114 = sphi 0, %s112
      %s115 = sphi 0, %s114
      %s129 = sphi 0, %s115
      %s133 = sphi 0, %s133
      %s135 = sphi 0, %s133
      %s136 = sphi 0, %s135
      %s150 = sphi 0, %s136
      %s154 = sphi 0, %s154
      %s156 = sphi 0, %s154
      %s157 = sphi 0, %s156
      %s171 = sphi 0, %s157
      %s175 = sphi 0, %s175
      %s177 = sphi 0, %s175
      %s178 = sphi 0, %s177
      %s192 = sphi 0, %s178
      %s196 = sphi 0, %s196
      %s198 = sphi 0, %s196
      %s199 = sphi 0, %s198
      %s213 = sphi 0, %s199
      %s217 = sphi 0, %s217
      %s219 = sphi 0, %s217
      %s220 = sphi 0, %s219
      %s234 = sphi 0, %s220
      %s238 = sphi 0, %s238
      %s240 = sphi 0, %s238
      %s241 = sphi 0, %s240
      %s255 = sphi 0, %s241
      %s259 = sphi 0, %s259
      %s261 = sphi 0, %s259
      %s262 = sphi 0, %s261
      %s276 = sphi 0, %s262
      %s280 = sphi 0, %s280
      %s282 = sphi 0, %s280
      %s283 = sphi 0, %s282
      %s297 = sphi 0, %s283
      %s301 = sphi 0, %s301
      %s303 = sphi 0, %s301
      %s304 = sphi 0, %s303
      %s318 = sphi 0, %s304
      %s322 = sphi 0, %s322
      %s324 = sphi 0, %s322
      %s325 = sphi 0, %s324
      %s339 = sphi 0, %s325
      %s343 = sphi 0, %s343
      %s345 = sphi 0, %s343
      %s346 = sphi 0, %s345
      %s360 = sphi 0, %s346
      %s364 = sphi 0, %s364
      %s366 = sphi 0, %s364
      %s367 = sphi 0, %s366
      %s381 = sphi 0, %s367
      %s385 = sphi 0, %s385
      %s387 = sphi 0, %s385
      %s388 = sphi 0, %s387
      %s402 = sphi 0, %s388
      %s406 = sphi 0, %s406
      %s408 = sphi 0, %s406
      %s409 = sphi 0, %s408
      %s423 = sphi 0, %s409
      %s427 = sphi 0, %s427
      %s429 = sphi 0, %s427
      %s430 = sphi 0, %s429
      %s444 = sphi 0, %s430
      %s448 = sphi 0, %s448
      %s450 = sphi 0, %s448
      %s451 = sphi 0, %s450
      %s465 = sphi 0, %s451
      %s469 = sphi 0, %s469
      %s471 = sphi 0, %s469
      %s472 = sphi 0, %s471
      %s486 = sphi 0, %s472
      %s490 = sphi 0, %s490
      %s492 = sphi 0, %s490
      %s493 = sphi 0, %s492
      %s507 = sphi 0, %s493
      %s513 = sphi 0, %s515
      %s516 = sphi 0, %s513
      %s517 = sphi 0, %s516
      %s533 = sphi 0, %s517
    $region4: #{tpu_custom_call.1} parent=1 // loop_header_branch
      %34 = sbr.rel (%p32) target = $region8
    $region5: #{tpu_custom_call.1} parent=1 // loop_body
      %s36 = ssub.s32 %s31, 1
      %s37 = ssub.s32 %s31, 2
      %s38 = sadd.s32 %s31, 1
      %s39 = ssub.s32 %s31, %s38
      %p40 = scmp.eq.s32.totalorder %s39, 0
      %s42 = sadd.s32 %s41, 1
      %s43 = scalar_select %p40, %s41, %s42
      %p46 = pneg %p40
      %p47 = scmp.eq.s32.totalorder %s31, 1
      %p48 = por %p46, %p47
      %p49 = scmp.ne.s32.totalorder %s41, %s44
      %p50 = scmp.eq.s32.totalorder %s31, 0
      %p51 = por %p49, %p50
      %p52 = scmp.ne.s32.totalorder %s41, %s44
      %p53 = scmp.eq.s32.totalorder %s36, 1
      %p54 = por %p52, %p53
      %p55 = scmp.ne.s32.totalorder %s44, %s45
      %p56 = scmp.eq.s32.totalorder %s36, 0
      %p57 = por %p55, %p56
      %p58 = scmp.ne.s32.totalorder %s44, %s45
      %p59 = scmp.eq.s32.totalorder %s37, 1
      %p60 = por %p58, %p59
      %p62 = scmp.ne.s32.totalorder %s45, %s61
      %p63 = scmp.eq.s32.totalorder %s37, 0
      %p64 = por %p62, %p63
      %s66 = sadd.s32 %s65, 1
      %p69 = scmp.eq.s32.totalorder %s31, 1
      %p70 = scmp.ne.s32.totalorder %s65, %s67
      %p71 = scmp.eq.s32.totalorder %s31, 0
      %p72 = por %p70, %p71
      %p73 = scmp.ne.s32.totalorder %s65, %s67
      %p74 = scmp.eq.s32.totalorder %s36, 1
      %p75 = por %p73, %p74
      %p76 = scmp.ne.s32.totalorder %s67, %s68
      %p77 = scmp.eq.s32.totalorder %s36, 0
      %p78 = por %p76, %p77
      %p79 = scmp.ne.s32.totalorder %s67, %s68
      %p80 = scmp.eq.s32.totalorder %s37, 1
      %p81 = por %p79, %p80
      %p83 = scmp.ne.s32.totalorder %s68, %s82
      %p84 = scmp.eq.s32.totalorder %s37, 0
      %p85 = por %p83, %p84
      %s86 = ssub.s32 %s31, %s38
      %p87 = scmp.eq.s32.totalorder %s86, 0
      %s89 = sadd.s32 %s88, 1
      %s90 = scalar_select %p87, %s88, %s89
      %p93 = pneg %p87
      %p94 = scmp.eq.s32.totalorder %s31, 1
      %p95 = por %p93, %p94
      %p96 = scmp.ne.s32.totalorder %s88, %s91
      %p97 = scmp.eq.s32.totalorder %s31, 0
      %p98 = por %p96, %p97
      %p99 = scmp.ne.s32.totalorder %s88, %s91
      %p100 = scmp.eq.s32.totalorder %s36, 1
      %p101 = por %p99, %p100
      %p102 = scmp.ne.s32.totalorder %s91, %s92
      %p103 = scmp.eq.s32.totalorder %s36, 0
      %p104 = por %p102, %p103
      %p105 = scmp.ne.s32.totalorder %s91, %s92
      %p106 = scmp.eq.s32.totalorder %s37, 1
      %p107 = por %p105, %p106
      %p109 = scmp.ne.s32.totalorder %s92, %s108
      %p110 = scmp.eq.s32.totalorder %s37, 0
      %p111 = por %p109, %p110
      %s113 = sadd.s32 %s112, 1
      %p116 = scmp.eq.s32.totalorder %s31, 1
      %p117 = scmp.ne.s32.totalorder %s112, %s114
      %p118 = scmp.eq.s32.totalorder %s31, 0
      %p119 = por %p117, %p118
      %p120 = scmp.ne.s32.totalorder %s112, %s114
      %p121 = scmp.eq.s32.totalorder %s36, 1
      %p122 = por %p120, %p121
      %p123 = scmp.ne.s32.totalorder %s114, %s115
      %p124 = scmp.eq.s32.totalorder %s36, 0
      %p125 = por %p123, %p124
      %p126 = scmp.ne.s32.totalorder %s114, %s115
      %p127 = scmp.eq.s32.totalorder %s37, 1
      %p128 = por %p126, %p127
      %p130 = scmp.ne.s32.totalorder %s115, %s129
      %p131 = scmp.eq.s32.totalorder %s37, 0
      %p132 = por %p130, %p131
      %s134 = sadd.s32 %s133, 1
      %p137 = scmp.eq.s32.totalorder %s31, 1
      %p138 = scmp.ne.s32.totalorder %s133, %s135
      %p139 = scmp.eq.s32.totalorder %s31, 0
      %p140 = por %p138, %p139
      %p141 = scmp.ne.s32.totalorder %s133, %s135
      %p142 = scmp.eq.s32.totalorder %s36, 1
      %p143 = por %p141, %p142
      %p144 = scmp.ne.s32.totalorder %s135, %s136
      %p145 = scmp.eq.s32.totalorder %s36, 0
      %p146 = por %p144, %p145
      %p147 = scmp.ne.s32.totalorder %s135, %s136
      %p148 = scmp.eq.s32.totalorder %s37, 1
      %p149 = por %p147, %p148
      %p151 = scmp.ne.s32.totalorder %s136, %s150
      %p152 = scmp.eq.s32.totalorder %s37, 0
      %p153 = por %p151, %p152
      %s155 = sadd.s32 %s154, 1
      %p158 = scmp.eq.s32.totalorder %s31, 1
      %p159 = scmp.ne.s32.totalorder %s154, %s156
      %p160 = scmp.eq.s32.totalorder %s31, 0
      %p161 = por %p159, %p160
      %p162 = scmp.ne.s32.totalorder %s154, %s156
      %p163 = scmp.eq.s32.totalorder %s36, 1
      %p164 = por %p162, %p163
      %p165 = scmp.ne.s32.totalorder %s156, %s157
      %p166 = scmp.eq.s32.totalorder %s36, 0
      %p167 = por %p165, %p166
      %p168 = scmp.ne.s32.totalorder %s156, %s157
      %p169 = scmp.eq.s32.totalorder %s37, 1
      %p170 = por %p168, %p169
      %p172 = scmp.ne.s32.totalorder %s157, %s171
      %p173 = scmp.eq.s32.totalorder %s37, 0
      %p174 = por %p172, %p173
      %s176 = sadd.s32 %s175, 1
      %p179 = scmp.eq.s32.totalorder %s31, 1
      %p180 = scmp.ne.s32.totalorder %s175, %s177
      %p181 = scmp.eq.s32.totalorder %s31, 0
      %p182 = por %p180, %p181
      %p183 = scmp.ne.s32.totalorder %s175, %s177
      %p184 = scmp.eq.s32.totalorder %s36, 1
      %p185 = por %p183, %p184
      %p186 = scmp.ne.s32.totalorder %s177, %s178
      %p187 = scmp.eq.s32.totalorder %s36, 0
      %p188 = por %p186, %p187
      %p189 = scmp.ne.s32.totalorder %s177, %s178
      %p190 = scmp.eq.s32.totalorder %s37, 1
      %p191 = por %p189, %p190
      %p193 = scmp.ne.s32.totalorder %s178, %s192
      %p194 = scmp.eq.s32.totalorder %s37, 0
      %p195 = por %p193, %p194
      %s197 = sadd.s32 %s196, 1
      %p200 = scmp.eq.s32.totalorder %s31, 1
      %p201 = scmp.ne.s32.totalorder %s196, %s198
      %p202 = scmp.eq.s32.totalorder %s31, 0
      %p203 = por %p201, %p202
      %p204 = scmp.ne.s32.totalorder %s196, %s198
      %p205 = scmp.eq.s32.totalorder %s36, 1
      %p206 = por %p204, %p205
      %p207 = scmp.ne.s32.totalorder %s198, %s199
      %p208 = scmp.eq.s32.totalorder %s36, 0
      %p209 = por %p207, %p208
      %p210 = scmp.ne.s32.totalorder %s198, %s199
      %p211 = scmp.eq.s32.totalorder %s37, 1
      %p212 = por %p210, %p211
      %p214 = scmp.ne.s32.totalorder %s199, %s213
      %p215 = scmp.eq.s32.totalorder %s37, 0
      %p216 = por %p214, %p215
      %s218 = sadd.s32 %s217, 1
      %p221 = scmp.eq.s32.totalorder %s31, 1
      %p222 = scmp.ne.s32.totalorder %s217, %s219
      %p223 = scmp.eq.s32.totalorder %s31, 0
      %p224 = por %p222, %p223
      %p225 = scmp.ne.s32.totalorder %s217, %s219
      %p226 = scmp.eq.s32.totalorder %s36, 1
      %p227 = por %p225, %p226
      %p228 = scmp.ne.s32.totalorder %s219, %s220
      %p229 = scmp.eq.s32.totalorder %s36, 0
      %p230 = por %p228, %p229
      %p231 = scmp.ne.s32.totalorder %s219, %s220
      %p232 = scmp.eq.s32.totalorder %s37, 1
      %p233 = por %p231, %p232
      %p235 = scmp.ne.s32.totalorder %s220, %s234
      %p236 = scmp.eq.s32.totalorder %s37, 0
      %p237 = por %p235, %p236
      %s239 = sadd.s32 %s238, 1
      %p242 = scmp.eq.s32.totalorder %s31, 1
      %p243 = scmp.ne.s32.totalorder %s238, %s240
      %p244 = scmp.eq.s32.totalorder %s31, 0
      %p245 = por %p243, %p244
      %p246 = scmp.ne.s32.totalorder %s238, %s240
      %p247 = scmp.eq.s32.totalorder %s36, 1
      %p248 = por %p246, %p247
      %p249 = scmp.ne.s32.totalorder %s240, %s241
      %p250 = scmp.eq.s32.totalorder %s36, 0
      %p251 = por %p249, %p250
      %p252 = scmp.ne.s32.totalorder %s240, %s241
      %p253 = scmp.eq.s32.totalorder %s37, 1
      %p254 = por %p252, %p253
      %p256 = scmp.ne.s32.totalorder %s241, %s255
      %p257 = scmp.eq.s32.totalorder %s37, 0
      %p258 = por %p256, %p257
      %s260 = sadd.s32 %s259, 1
      %p263 = scmp.eq.s32.totalorder %s31, 1
      %p264 = scmp.ne.s32.totalorder %s259, %s261
      %p265 = scmp.eq.s32.totalorder %s31, 0
      %p266 = por %p264, %p265
      %p267 = scmp.ne.s32.totalorder %s259, %s261
      %p268 = scmp.eq.s32.totalorder %s36, 1
      %p269 = por %p267, %p268
      %p270 = scmp.ne.s32.totalorder %s261, %s262
      %p271 = scmp.eq.s32.totalorder %s36, 0
      %p272 = por %p270, %p271
      %p273 = scmp.ne.s32.totalorder %s261, %s262
      %p274 = scmp.eq.s32.totalorder %s37, 1
      %p275 = por %p273, %p274
      %p277 = scmp.ne.s32.totalorder %s262, %s276
      %p278 = scmp.eq.s32.totalorder %s37, 0
      %p279 = por %p277, %p278
      %s281 = sadd.s32 %s280, 1
      %p284 = scmp.eq.s32.totalorder %s31, 1
      %p285 = scmp.ne.s32.totalorder %s280, %s282
      %p286 = scmp.eq.s32.totalorder %s31, 0
      %p287 = por %p285, %p286
      %p288 = scmp.ne.s32.totalorder %s280, %s282
      %p289 = scmp.eq.s32.totalorder %s36, 1
      %p290 = por %p288, %p289
      %p291 = scmp.ne.s32.totalorder %s282, %s283
      %p292 = scmp.eq.s32.totalorder %s36, 0
      %p293 = por %p291, %p292
      %p294 = scmp.ne.s32.totalorder %s282, %s283
      %p295 = scmp.eq.s32.totalorder %s37, 1
      %p296 = por %p294, %p295
      %p298 = scmp.ne.s32.totalorder %s283, %s297
      %p299 = scmp.eq.s32.totalorder %s37, 0
      %p300 = por %p298, %p299
      %s302 = sadd.s32 %s301, 1
      %p305 = scmp.eq.s32.totalorder %s31, 1
      %p306 = scmp.ne.s32.totalorder %s301, %s303
      %p307 = scmp.eq.s32.totalorder %s31, 0
      %p308 = por %p306, %p307
      %p309 = scmp.ne.s32.totalorder %s301, %s303
      %p310 = scmp.eq.s32.totalorder %s36, 1
      %p311 = por %p309, %p310
      %p312 = scmp.ne.s32.totalorder %s303, %s304
      %p313 = scmp.eq.s32.totalorder %s36, 0
      %p314 = por %p312, %p313
      %p315 = scmp.ne.s32.totalorder %s303, %s304
      %p316 = scmp.eq.s32.totalorder %s37, 1
      %p317 = por %p315, %p316
      %p319 = scmp.ne.s32.totalorder %s304, %s318
      %p320 = scmp.eq.s32.totalorder %s37, 0
      %p321 = por %p319, %p320
      %s323 = sadd.s32 %s322, 1
      %p326 = scmp.eq.s32.totalorder %s31, 1
      %p327 = scmp.ne.s32.totalorder %s322, %s324
      %p328 = scmp.eq.s32.totalorder %s31, 0
      %p329 = por %p327, %p328
      %p330 = scmp.ne.s32.totalorder %s322, %s324
      %p331 = scmp.eq.s32.totalorder %s36, 1
      %p332 = por %p330, %p331
      %p333 = scmp.ne.s32.totalorder %s324, %s325
      %p334 = scmp.eq.s32.totalorder %s36, 0
      %p335 = por %p333, %p334
      %p336 = scmp.ne.s32.totalorder %s324, %s325
      %p337 = scmp.eq.s32.totalorder %s37, 1
      %p338 = por %p336, %p337
      %p340 = scmp.ne.s32.totalorder %s325, %s339
      %p341 = scmp.eq.s32.totalorder %s37, 0
      %p342 = por %p340, %p341
      %s344 = sadd.s32 %s343, 1
      %p347 = scmp.eq.s32.totalorder %s31, 1
      %p348 = scmp.ne.s32.totalorder %s343, %s345
      %p349 = scmp.eq.s32.totalorder %s31, 0
      %p350 = por %p348, %p349
      %p351 = scmp.ne.s32.totalorder %s343, %s345
      %p352 = scmp.eq.s32.totalorder %s36, 1
      %p353 = por %p351, %p352
      %p354 = scmp.ne.s32.totalorder %s345, %s346
      %p355 = scmp.eq.s32.totalorder %s36, 0
      %p356 = por %p354, %p355
      %p357 = scmp.ne.s32.totalorder %s345, %s346
      %p358 = scmp.eq.s32.totalorder %s37, 1
      %p359 = por %p357, %p358
      %p361 = scmp.ne.s32.totalorder %s346, %s360
      %p362 = scmp.eq.s32.totalorder %s37, 0
      %p363 = por %p361, %p362
      %s365 = sadd.s32 %s364, 1
      %p368 = scmp.eq.s32.totalorder %s31, 1
      %p369 = scmp.ne.s32.totalorder %s364, %s366
      %p370 = scmp.eq.s32.totalorder %s31, 0
      %p371 = por %p369, %p370
      %p372 = scmp.ne.s32.totalorder %s364, %s366
      %p373 = scmp.eq.s32.totalorder %s36, 1
      %p374 = por %p372, %p373
      %p375 = scmp.ne.s32.totalorder %s366, %s367
      %p376 = scmp.eq.s32.totalorder %s36, 0
      %p377 = por %p375, %p376
      %p378 = scmp.ne.s32.totalorder %s366, %s367
      %p379 = scmp.eq.s32.totalorder %s37, 1
      %p380 = por %p378, %p379
      %p382 = scmp.ne.s32.totalorder %s367, %s381
      %p383 = scmp.eq.s32.totalorder %s37, 0
      %p384 = por %p382, %p383
      %s386 = sadd.s32 %s385, 1
      %p389 = scmp.eq.s32.totalorder %s31, 1
      %p390 = scmp.ne.s32.totalorder %s385, %s387
      %p391 = scmp.eq.s32.totalorder %s31, 0
      %p392 = por %p390, %p391
      %p393 = scmp.ne.s32.totalorder %s385, %s387
      %p394 = scmp.eq.s32.totalorder %s36, 1
      %p395 = por %p393, %p394
      %p396 = scmp.ne.s32.totalorder %s387, %s388
      %p397 = scmp.eq.s32.totalorder %s36, 0
      %p398 = por %p396, %p397
      %p399 = scmp.ne.s32.totalorder %s387, %s388
      %p400 = scmp.eq.s32.totalorder %s37, 1
      %p401 = por %p399, %p400
      %p403 = scmp.ne.s32.totalorder %s388, %s402
      %p404 = scmp.eq.s32.totalorder %s37, 0
      %p405 = por %p403, %p404
      %s407 = sadd.s32 %s406, 1
      %p410 = scmp.eq.s32.totalorder %s31, 1
      %p411 = scmp.ne.s32.totalorder %s406, %s408
      %p412 = scmp.eq.s32.totalorder %s31, 0
      %p413 = por %p411, %p412
      %p414 = scmp.ne.s32.totalorder %s406, %s408
      %p415 = scmp.eq.s32.totalorder %s36, 1
      %p416 = por %p414, %p415
      %p417 = scmp.ne.s32.totalorder %s408, %s409
      %p418 = scmp.eq.s32.totalorder %s36, 0
      %p419 = por %p417, %p418
      %p420 = scmp.ne.s32.totalorder %s408, %s409
      %p421 = scmp.eq.s32.totalorder %s37, 1
      %p422 = por %p420, %p421
      %p424 = scmp.ne.s32.totalorder %s409, %s423
      %p425 = scmp.eq.s32.totalorder %s37, 0
      %p426 = por %p424, %p425
      %s428 = sadd.s32 %s427, 1
      %p431 = scmp.eq.s32.totalorder %s31, 1
      %p432 = scmp.ne.s32.totalorder %s427, %s429
      %p433 = scmp.eq.s32.totalorder %s31, 0
      %p434 = por %p432, %p433
      %p435 = scmp.ne.s32.totalorder %s427, %s429
      %p436 = scmp.eq.s32.totalorder %s36, 1
      %p437 = por %p435, %p436
      %p438 = scmp.ne.s32.totalorder %s429, %s430
      %p439 = scmp.eq.s32.totalorder %s36, 0
      %p440 = por %p438, %p439
      %p441 = scmp.ne.s32.totalorder %s429, %s430
      %p442 = scmp.eq.s32.totalorder %s37, 1
      %p443 = por %p441, %p442
      %p445 = scmp.ne.s32.totalorder %s430, %s444
      %p446 = scmp.eq.s32.totalorder %s37, 0
      %p447 = por %p445, %p446
      %s449 = sadd.s32 %s448, 1
      %p452 = scmp.eq.s32.totalorder %s31, 1
      %p453 = scmp.ne.s32.totalorder %s448, %s450
      %p454 = scmp.eq.s32.totalorder %s31, 0
      %p455 = por %p453, %p454
      %p456 = scmp.ne.s32.totalorder %s448, %s450
      %p457 = scmp.eq.s32.totalorder %s36, 1
      %p458 = por %p456, %p457
      %p459 = scmp.ne.s32.totalorder %s450, %s451
      %p460 = scmp.eq.s32.totalorder %s36, 0
      %p461 = por %p459, %p460
      %p462 = scmp.ne.s32.totalorder %s450, %s451
      %p463 = scmp.eq.s32.totalorder %s37, 1
      %p464 = por %p462, %p463
      %p466 = scmp.ne.s32.totalorder %s451, %s465
      %p467 = scmp.eq.s32.totalorder %s37, 0
      %p468 = por %p466, %p467
      %s470 = sadd.s32 %s469, 1
      %p473 = scmp.eq.s32.totalorder %s31, 1
      %p474 = scmp.ne.s32.totalorder %s469, %s471
      %p475 = scmp.eq.s32.totalorder %s31, 0
      %p476 = por %p474, %p475
      %p477 = scmp.ne.s32.totalorder %s469, %s471
      %p478 = scmp.eq.s32.totalorder %s36, 1
      %p479 = por %p477, %p478
      %p480 = scmp.ne.s32.totalorder %s471, %s472
      %p481 = scmp.eq.s32.totalorder %s36, 0
      %p482 = por %p480, %p481
      %p483 = scmp.ne.s32.totalorder %s471, %s472
      %p484 = scmp.eq.s32.totalorder %s37, 1
      %p485 = por %p483, %p484
      %p487 = scmp.ne.s32.totalorder %s472, %s486
      %p488 = scmp.eq.s32.totalorder %s37, 0
      %p489 = por %p487, %p488
      %s491 = sadd.s32 %s490, 1
      %p494 = scmp.eq.s32.totalorder %s31, 1
      %p495 = scmp.ne.s32.totalorder %s490, %s492
      %p496 = scmp.eq.s32.totalorder %s31, 0
      %p497 = por %p495, %p496
      %p498 = scmp.ne.s32.totalorder %s490, %s492
      %p499 = scmp.eq.s32.totalorder %s36, 1
      %p500 = por %p498, %p499
      %p501 = scmp.ne.s32.totalorder %s492, %s493
      %p502 = scmp.eq.s32.totalorder %s36, 0
      %p503 = por %p501, %p502
      %p504 = scmp.ne.s32.totalorder %s492, %s493
      %p505 = scmp.eq.s32.totalorder %s37, 1
      %p506 = por %p504, %p505
      %p508 = scmp.ne.s32.totalorder %s493, %s507
      %p509 = scmp.eq.s32.totalorder %s37, 0
      %p510 = por %p508, %p509
      %s511 = ssub.s32 %s31, %s38
      %p512 = scmp.eq.s32.totalorder %s511, 0
      %s514 = sadd.s32 %s513, 1
      %s515 = scalar_select %p512, %s513, %s514
      %p518 = pneg %p512
      %p519 = scmp.eq.s32.totalorder %s31, 1
      %p520 = por %p518, %p519
      %p521 = scmp.ne.s32.totalorder %s513, %s516
      %p522 = scmp.eq.s32.totalorder %s31, 0
      %p523 = por %p521, %p522
      %p524 = scmp.ne.s32.totalorder %s513, %s516
      %p525 = scmp.eq.s32.totalorder %s36, 1
      %p526 = por %p524, %p525
      %p527 = scmp.ne.s32.totalorder %s516, %s517
      %p528 = scmp.eq.s32.totalorder %s36, 0
      %p529 = por %p527, %p528
      %p530 = scmp.ne.s32.totalorder %s516, %s517
      %p531 = scmp.eq.s32.totalorder %s37, 1
      %p532 = por %p530, %p531
      %p534 = scmp.ne.s32.totalorder %s517, %s533
      %p535 = scmp.eq.s32.totalorder %s37, 0
      %p536 = por %p534, %p535
      %p537 = scmp.le.s32.totalorder 1, %s31
      %p538 = scmp.lt.s32.totalorder %s31, 3
      %p539 = pnand %p537, %p538
      %p540 = pneg %p539
      // Predicated region
      $region9: #{tpu_custom_call.1} parent=5 // pred_check
        _
      $region10: #{tpu_custom_call.1} parent=5 // pred_check_branch
        %542 = sbr.rel (%p539) target = $region12
      $region11: #{tpu_custom_call.1} parent=5 // pred_region
        %s543 = ssub.s32 %s31, 1
        // Predicated region
        $region13: #{tpu_custom_call.1} parent=11 // pred_check
          %p544 = pneg %p78
        $region14: #{tpu_custom_call.1} parent=11 // pred_check_branch
          %546 = sbr.rel (%p544) target = $region16
        $region15: #{tpu_custom_call.1} parent=11 // pred_region
          _
        $region16: #{tpu_custom_call.1} parent=11 // pred_fallthru
          _
        // Predicated region
        $region17: #{tpu_custom_call.1} parent=11 // pred_check
          %p547 = pneg %p125
        $region18: #{tpu_custom_call.1} parent=11 // pred_check_branch
          %549 = sbr.rel (%p547) target = $region20
        $region19: #{tpu_custom_call.1} parent=11 // pred_region
          _
        $region20: #{tpu_custom_call.1} parent=11 // pred_fallthru
          _
        // Predicated region
        $region21: #{tpu_custom_call.1} parent=11 // pred_check
          %p550 = pneg %p146
        $region22: #{tpu_custom_call.1} parent=11 // pred_check_branch
          %552 = sbr.rel (%p550) target = $region24
        $region23: #{tpu_custom_call.1} parent=11 // pred_region
          _
        $region24: #{tpu_custom_call.1} parent=11 // pred_fallthru
          _
        // Predicated region
        $region25: #{tpu_custom_call.1} parent=11 // pred_check
          %p553 = pneg %p167
        $region26: #{tpu_custom_call.1} parent=11 // pred_check_branch
          %555 = sbr.rel (%p553) target = $region28
        $region27: #{tpu_custom_call.1} parent=11 // pred_region
          _
        $region28: #{tpu_custom_call.1} parent=11 // pred_fallthru
          _
        // Predicated region
        $region29: #{tpu_custom_call.1} parent=11 // pred_check
          %p556 = pneg %p188
        $region30: #{tpu_custom_call.1} parent=11 // pred_check_branch
          %558 = sbr.rel (%p556) target = $region32
        $region31: #{tpu_custom_call.1} parent=11 // pred_region
          _
        $region32: #{tpu_custom_call.1} parent=11 // pred_fallthru
          _
        // Predicated region
        $region33: #{tpu_custom_call.1} parent=11 // pred_check
          %p559 = pneg %p209
        $region34: #{tpu_custom_call.1} parent=11 // pred_check_branch
          %561 = sbr.rel (%p559) target = $region36
        $region35: #{tpu_custom_call.1} parent=11 // pred_region
          _
        $region36: #{tpu_custom_call.1} parent=11 // pred_fallthru
          _
        // Predicated region
        $region37: #{tpu_custom_call.1} parent=11 // pred_check
          %p562 = pneg %p230
        $region38: #{tpu_custom_call.1} parent=11 // pred_check_branch
          %564 = sbr.rel (%p562) target = $region40
        $region39: #{tpu_custom_call.1} parent=11 // pred_region
          _
        $region40: #{tpu_custom_call.1} parent=11 // pred_fallthru
          _
        // Predicated region
        $region41: #{tpu_custom_call.1} parent=11 // pred_check
          %p565 = pneg %p251
        $region42: #{tpu_custom_call.1} parent=11 // pred_check_branch
          %567 = sbr.rel (%p565) target = $region44
        $region43: #{tpu_custom_call.1} parent=11 // pred_region
          _
        $region44: #{tpu_custom_call.1} parent=11 // pred_fallthru
          _
        // Predicated region
        $region45: #{tpu_custom_call.1} parent=11 // pred_check
          %p568 = pneg %p272
        $region46: #{tpu_custom_call.1} parent=11 // pred_check_branch
          %570 = sbr.rel (%p568) target = $region48
        $region47: #{tpu_custom_call.1} parent=11 // pred_region
          _
        $region48: #{tpu_custom_call.1} parent=11 // pred_fallthru
          _
        // Predicated region
        $region49: #{tpu_custom_call.1} parent=11 // pred_check
          %p571 = pneg %p293
        $region50: #{tpu_custom_call.1} parent=11 // pred_check_branch
          %573 = sbr.rel (%p571) target = $region52
        $region51: #{tpu_custom_call.1} parent=11 // pred_region
          _
        $region52: #{tpu_custom_call.1} parent=11 // pred_fallthru
          _
        // Predicated region
        $region53: #{tpu_custom_call.1} parent=11 // pred_check
          %p574 = pneg %p314
        $region54: #{tpu_custom_call.1} parent=11 // pred_check_branch
          %576 = sbr.rel (%p574) target = $region56
        $region55: #{tpu_custom_call.1} parent=11 // pred_region
          _
        $region56: #{tpu_custom_call.1} parent=11 // pred_fallthru
          _
        // Predicated region
        $region57: #{tpu_custom_call.1} parent=11 // pred_check
          %p577 = pneg %p335
        $region58: #{tpu_custom_call.1} parent=11 // pred_check_branch
          %579 = sbr.rel (%p577) target = $region60
        $region59: #{tpu_custom_call.1} parent=11 // pred_region
          _
        $region60: #{tpu_custom_call.1} parent=11 // pred_fallthru
          _
        // Predicated region
        $region61: #{tpu_custom_call.1} parent=11 // pred_check
          %p580 = pneg %p356
        $region62: #{tpu_custom_call.1} parent=11 // pred_check_branch
          %582 = sbr.rel (%p580) target = $region64
        $region63: #{tpu_custom_call.1} parent=11 // pred_region
          _
        $region64: #{tpu_custom_call.1} parent=11 // pred_fallthru
          _
        // Predicated region
        $region65: #{tpu_custom_call.1} parent=11 // pred_check
          %p583 = pneg %p377
        $region66: #{tpu_custom_call.1} parent=11 // pred_check_branch
          %585 = sbr.rel (%p583) target = $region68
        $region67: #{tpu_custom_call.1} parent=11 // pred_region
          _
        $region68: #{tpu_custom_call.1} parent=11 // pred_fallthru
          _
        // Predicated region
        $region69: #{tpu_custom_call.1} parent=11 // pred_check
          %p586 = pneg %p398
        $region70: #{tpu_custom_call.1} parent=11 // pred_check_branch
          %588 = sbr.rel (%p586) target = $region72
        $region71: #{tpu_custom_call.1} parent=11 // pred_region
          _
        $region72: #{tpu_custom_call.1} parent=11 // pred_fallthru
          _
        // Predicated region
        $region73: #{tpu_custom_call.1} parent=11 // pred_check
          %p589 = pneg %p419
        $region74: #{tpu_custom_call.1} parent=11 // pred_check_branch
          %591 = sbr.rel (%p589) target = $region76
        $region75: #{tpu_custom_call.1} parent=11 // pred_region
          _
        $region76: #{tpu_custom_call.1} parent=11 // pred_fallthru
          _
        // Predicated region
        $region77: #{tpu_custom_call.1} parent=11 // pred_check
          %p592 = pneg %p440
        $region78: #{tpu_custom_call.1} parent=11 // pred_check_branch
          %594 = sbr.rel (%p592) target = $region80
        $region79: #{tpu_custom_call.1} parent=11 // pred_region
          _
        $region80: #{tpu_custom_call.1} parent=11 // pred_fallthru
          _
        // Predicated region
        $region81: #{tpu_custom_call.1} parent=11 // pred_check
          %p595 = pneg %p461
        $region82: #{tpu_custom_call.1} parent=11 // pred_check_branch
          %597 = sbr.rel (%p595) target = $region84
        $region83: #{tpu_custom_call.1} parent=11 // pred_region
          _
        $region84: #{tpu_custom_call.1} parent=11 // pred_fallthru
          _
        // Predicated region
        $region85: #{tpu_custom_call.1} parent=11 // pred_check
          %p598 = pneg %p482
        $region86: #{tpu_custom_call.1} parent=11 // pred_check_branch
          %600 = sbr.rel (%p598) target = $region88
        $region87: #{tpu_custom_call.1} parent=11 // pred_region
          _
        $region88: #{tpu_custom_call.1} parent=11 // pred_fallthru
          _
        // Predicated region
        $region89: #{tpu_custom_call.1} parent=11 // pred_check
          %p601 = pneg %p503
        $region90: #{tpu_custom_call.1} parent=11 // pred_check_branch
          %603 = sbr.rel (%p601) target = $region92
        $region91: #{tpu_custom_call.1} parent=11 // pred_region
          _
        $region92: #{tpu_custom_call.1} parent=11 // pred_fallthru
          _
      $region12: #{tpu_custom_call.1} parent=5 // pred_fallthru
        _
      %p604 = scmp.lt.s32.totalorder %s31, 2
      // Predicated region
      $region93: #{tpu_custom_call.1} parent=5 // pred_check
        %p605 = pneg %p604
      $region94: #{tpu_custom_call.1} parent=5 // pred_check_branch
        %607 = sbr.rel (%p605) target = $region96
      $region95: #{tpu_custom_call.1} parent=5 // pred_region
        // Predicated region
        $region97: #{tpu_custom_call.1} parent=95 // pred_check
          %p608 = pneg %p51
        $region98: #{tpu_custom_call.1} parent=95 // pred_check_branch
          %610 = sbr.rel (%p608) target = $region100
        $region99: #{tpu_custom_call.1} parent=95 // pred_region
          %p611 = scmp.lt.s32.totalorder %s31, 1
          %s612 = scalar_select %p611, %s31, 1
          %s613 = smul.addr %s612, 8
          %s614 = scalar_lea.vmem %s0, %s613
        $region100: #{tpu_custom_call.1} parent=95 // pred_fallthru
          _
        // Predicated region
        $region101: #{tpu_custom_call.1} parent=95 // pred_check
          %p615 = pneg %p98
        $region102: #{tpu_custom_call.1} parent=95 // pred_check_branch
          %617 = sbr.rel (%p615) target = $region104
        $region103: #{tpu_custom_call.1} parent=95 // pred_region
          %p618 = scmp.lt.s32.totalorder %s31, 1
          %s619 = scalar_select %p618, %s31, 1
          %s620 = smul.addr %s619, 2
          %s621 = smul.addr %s620, 8
          %s622 = scalar_lea.vmem %s2, %s621
        $region104: #{tpu_custom_call.1} parent=95 // pred_fallthru
          _
      $region96: #{tpu_custom_call.1} parent=5 // pred_fallthru
        _
      %p623 = scmp.le.s32.totalorder 1, %s31
      %p624 = scmp.lt.s32.totalorder %s31, 3
      %p625 = pnand %p623, %p624
      %p626 = pneg %p625
      // Predicated region
      $region105: #{tpu_custom_call.1} parent=5 // pred_check
        _
      $region106: #{tpu_custom_call.1} parent=5 // pred_check_branch
        %628 = sbr.rel (%p625) target = $region108
      $region107: #{tpu_custom_call.1} parent=5 // pred_region
        %s629 = ssub.s32 %s31, 1
        %p630 = scmp.lt.s32.totalorder %s36, 1
        %s631 = scalar_select %p630, %s36, 1
        %s632 = smul.addr %s631, 8
        %s633 = scalar_lea.vmem %s0, %s632
        %p634 = pneg %p57
        %p635 = pneg %p54
        %p636 = pneg %p78
        %p637 = pneg %p75
        %p638 = scmp.lt.s32.totalorder %s36, 1
        %s639 = scalar_select %p638, %s36, 1
        %s640 = smul.addr %s639, 2
        %s641 = smul.addr %s640, 8
        %s642 = scalar_lea.vmem %s2, %s641
        %p643 = pneg %p104
        %p644 = pneg %p101
        %p645 = pneg %p125
        %p646 = pneg %p122
        %p647 = pneg %p146
        %p648 = pneg %p143
        %p649 = pneg %p167
        %p650 = pneg %p164
        %p651 = pneg %p188
        %p652 = pneg %p185
        %p653 = pneg %p209
        %p654 = pneg %p206
        %p655 = pneg %p230
        %p656 = pneg %p227
        %p657 = pneg %p251
        %p658 = pneg %p248
        %p659 = pneg %p272
        %p660 = pneg %p269
        %p661 = pneg %p293
        %p662 = pneg %p290
        %p663 = pneg %p314
        %p664 = pneg %p311
        %p665 = pneg %p335
        %p666 = pneg %p332
        %p667 = pneg %p356
        %p668 = pneg %p353
        %p669 = pneg %p377
        %p670 = pneg %p374
        %p671 = pneg %p398
        %p672 = pneg %p395
        %p673 = pneg %p419
        %p674 = pneg %p416
        %p675 = pneg %p440
        %p676 = pneg %p437
        %p677 = pneg %p461
        %p678 = pneg %p458
        %p679 = pneg %p482
        %p680 = pneg %p479
        %p681 = pneg %p503
        %p682 = pneg %p500
        %p683 = pneg %p529
        %p684 = pneg %p526
        %s685 = sand.u32 %s516, 1
        %s686 = scalar_lea.sflag [#allocation3], %s685
        %s687 = sand.u32 %s516, 1
        %s688 = smul.addr %s687, 16
        %s689 = scalar_lea.vmem [#allocation2], %s688
        %p690 = scmp.lt.s32.totalorder %s36, 1
        %s691 = scalar_select %p690, %s36, 1
        %s692 = smul.addr %s691, 8
        %s693 = scalar_lea.vmem %s0, %s692
        %p694 = scmp.lt.s32.totalorder %s36, 1
        %s695 = scalar_select %p694, %s36, 1
        %s696 = smul.addr %s695, 2
        %s697 = smul.addr %s696, 8
        %s698 = scalar_lea.vmem %s2, %s697
        %v700 = vld [vmem:[%s693] sm:$0xff]
        %v701 = vld [vmem:[%s1] sm:$0xff]
        %v702 = vmul.f32 %v701, 0.125
        %v703 = vadd.f32 %v700, %v702
        %v704 = vld [vmem:[%s698] sm:$0xff]
        %v705 = vld [vmem:[%s698 + $0x8] sm:$0xff]
        %vm706 = vcmask 523264
        %v707 = vsel %vm706, %v703, 0.0
        %708 = vadd.xlane.f32.xlu0 %v707
        %v709 = vpop.xlane.xlu0 %708
        %v710 = vrcp.pop 64.0
        %v711 = vmul.f32 %v709, %v710
        %v712 = vsub.f32 %v703, %v711
        %v713 = vmul.f32 %v712, %v712
        %v714 = vsel %vm706, %v713, 0.0
        %715 = vadd.xlane.f32.xlu0 %v714
        %v716 = vpop.xlane.xlu0 %715
        %v717 = vmul.f32 %v716, %v710
        %v718 = vadd.f32 %v717, 1e-05
        %v719 = vrsqrt.pop %v718
        %v720 = vmul.f32 %v712, %v719
        %v721 = vld [vmem:[%s3] sm:$0x1]
        %v723 = vlaneseq
        %v724 = vshrl.u32 %v723, 7
        %v725 = vsub.s32 0, %v724
        %v726 = vrot.slane %v721, %v725
        %v728 = vmul.f32 %v720, %v726
        %v729 = vld [vmem:[%s4] sm:$0x1]
        %v731 = vlaneseq
        %v732 = vshrl.u32 %v731, 7
        %v733 = vsub.s32 0, %v732
        %v734 = vrot.slane %v729, %v733
        %v736 = vadd.f32 %v728, %v734
        %v737 = vsel %vm706, %v704, 0.0
        %738 = vadd.xlane.f32.xlu0 %v737
        %v739 = vpop.xlane.xlu0 %738
        %v740 = vsel %vm706, %v705, 0.0
        %741 = vadd.xlane.f32.xlu0 %v740
        %v742 = vpop.xlane.xlu0 %741
        %v743 = vmul.f32 %v739, %v710
        %v744 = vmul.f32 %v742, %v710
        %v745 = vsub.f32 %v704, %v743
        %v746 = vsub.f32 %v705, %v744
        %v747 = vmul.f32 %v745, %v745
        %v748 = vmul.f32 %v746, %v746
        %v749 = vsel %vm706, %v747, 0.0
        %750 = vadd.xlane.f32.xlu0 %v749
        %v751 = vpop.xlane.xlu0 %750
        %v752 = vsel %vm706, %v748, 0.0
        %753 = vadd.xlane.f32.xlu0 %v752
        %v754 = vpop.xlane.xlu0 %753
        %v755 = vmul.f32 %v751, %v710
        %v756 = vmul.f32 %v754, %v710
        %v757 = vadd.f32 %v755, 1e-05
        %v758 = vadd.f32 %v756, 1e-05
        %v759 = vrsqrt.pop %v757
        %v760 = vrsqrt.pop %v758
        %v761 = vmul.f32 %v745, %v759
        %v762 = vmul.f32 %v746, %v760
        %v763 = vld [vmem:[%s5] sm:$0x1]
        %v765 = vlaneseq
        %v766 = vshrl.u32 %v765, 7
        %v767 = vsub.s32 0, %v766
        %v768 = vrot.slane %v763, %v767
        %v770 = vmul.f32 %v761, %v768
        %v771 = vmul.f32 %v762, %v768
        %v772 = vld [vmem:[%s6] sm:$0x1]
        %v774 = vlaneseq
        %v775 = vshrl.u32 %v774, 7
        %v776 = vsub.s32 0, %v775
        %v777 = vrot.slane %v772, %v776
        %v779 = vadd.f32 %v770, %v777
        %v780 = vadd.f32 %v771, %v777
        %v781 = vpack.c.bf16 %v780, %v779
        %v782 = vpack.c.bf16 %v779, %v736
        %v783 = vpack.c.bf16 %v780, %v780
        %v784 = vld [vmem:[%s13] sm:$0x1]
        %v786 = vlaneseq
        %v787 = vshrl.u32 %v786, 7
        %v788 = vsub.s32 0, %v787
        %v789 = vrot.slane %v784, %v788
        %v791 = vadd.f32 %v704, %v789
        %v792 = vadd.f32 %v705, %v789
        %v793 = vld [vmem:[%s7] sm:$0xf]
        %v794 = vld [vmem:[%s7 + $0x4] sm:$0xf]
        %v795 = vld [vmem:[%s7 + $0x8] sm:$0xf]
        %v796 = vld [vmem:[%s7 + $0xc] sm:$0xf]
        %v797 = vld [vmem:[%s7 + $0x10] sm:$0xf]
        %v798 = vld [vmem:[%s7 + $0x14] sm:$0xf]
        %v799 = vld [vmem:[%s7 + $0x18] sm:$0xf]
        %v800 = vld [vmem:[%s7 + $0x1c] sm:$0xf]
        %v809 = vunpack.c.l.b16 %v793
        %v810 = vunpack.c.l.b16 %v794
        %v811 = vunpack.c.l.b16 %v795
        %v812 = vunpack.c.l.b16 %v796
        %v813 = vunpack.c.l.b16 %v797
        %v814 = vunpack.c.l.b16 %v798
        %v815 = vunpack.c.l.b16 %v799
        %v816 = vunpack.c.l.b16 %v800
        %v817 = vpack.c.b16 %v810, %v809
        %v818 = vpack.c.b16 %v812, %v811
        %v819 = vpack.c.b16 %v814, %v813
        %v820 = vpack.c.b16 %v816, %v815
        %v826 = vsel %vm706, %v781, 0
        %828 = vmatprep.subr.bf16.mxu0 0
        %829 = vmatpush1.bf16.msra.mxu0 0
        %830 = vmatprep.subr.bf16.mxu0 0
        %831 = vmatpush1.bf16.msra.mxu0 0
        %832 = vmatprep.subr.bf16.mxu0 0
        %833 = vmatpush1.bf16.msra.mxu0 0
        %834 = vmatprep.subr.bf16.mxu0 0
        %835 = vmatpush1.bf16.msra.mxu0 0
        %836 = vmatprep.subr.bf16.mxu0 0
        %837 = vmatpush1.bf16.msra.mxu0 %v820
        %838 = vmatprep.subr.bf16.mxu0 0
        %839 = vmatpush1.bf16.msra.mxu0 %v819
        %840 = vmatprep.subr.bf16.mxu0 0
        %841 = vmatpush1.bf16.msra.mxu0 %v818
        %842 = vmatprep.subr.bf16.mxu0 0
        %843 = vmatpush1.bf16.msra.mxu0 %v817
        %844 = vmatprep.subr.bf16.mxu0 0
        %845 = vmatpush2.bf16.msra.mxu0 0
        %846 = vmatprep.subr.bf16.mxu0 0
        %847 = vmatpush2.bf16.msra.mxu0 0
        %848 = vmatprep.subr.bf16.mxu0 0
        %849 = vmatpush2.bf16.msra.mxu0 0
        %850 = vmatprep.subr.bf16.mxu0 0
        %851 = vmatpush2.bf16.msra.mxu0 0
        %852 = vmatprep.subr.bf16.mxu0 0
        %853 = vmatpush2.bf16.msra.mxu0 0
        %854 = vmatprep.subr.bf16.mxu0 0
        %855 = vmatpush2.bf16.msra.mxu0 0
        %856 = vmatprep.subr.bf16.mxu0 0
        %857 = vmatpush2.bf16.msra.mxu0 0
        %858 = vmatprep.subr.bf16.mxu0 0
        %859 = vmatpush2.bf16.msra.mxu0 0
        %860 = vmatprep.mubr.bf16.mxu0 0
        %861 = vmatmul.mubr.bf16.gmra.mxu0 %v826
        %v862 = vpop.f32.mrf.mxu0
        %v863 = vadd.f32 0.0, %v862
        %v864 = vpop.f32.mrf.mxu0
        %v865 = vpop.f32.mrf.mxu0
        %v866 = vadd.f32 0.0, %v865
        %v867 = vpop.f32.mrf.mxu0
        %868 = vdwg.mxu0
        %v869 = vld [vmem:[%s8] sm:$0xf]
        %v870 = vld [vmem:[%s8 + $0x4] sm:$0xf]
        %v871 = vld [vmem:[%s8 + $0x8] sm:$0xf]
        %v872 = vld [vmem:[%s8 + $0xc] sm:$0xf]
        %v873 = vld [vmem:[%s8 + $0x10] sm:$0xf]
        %v874 = vld [vmem:[%s8 + $0x14] sm:$0xf]
        %v875 = vld [vmem:[%s8 + $0x18] sm:$0xf]
        %v876 = vld [vmem:[%s8 + $0x1c] sm:$0xf]
        %v885 = vunpack.c.l.b16 %v869
        %v886 = vunpack.c.l.b16 %v870
        %v887 = vunpack.c.l.b16 %v871
        %v888 = vunpack.c.l.b16 %v872
        %v889 = vunpack.c.l.b16 %v873
        %v890 = vunpack.c.l.b16 %v874
        %v891 = vunpack.c.l.b16 %v875
        %v892 = vunpack.c.l.b16 %v876
        %v893 = vpack.c.b16 %v886, %v885
        %v894 = vpack.c.b16 %v888, %v887
        %v895 = vpack.c.b16 %v890, %v889
        %v896 = vpack.c.b16 %v892, %v891
        %v902 = vsel %vm706, %v782, 0
        %v905 = vsel %vm706, %v783, 0
        %907 = vmatprep.subr.bf16.mxu0 0
        %908 = vmatpush1.bf16.msra.mxu0 0
        %909 = vmatprep.subr.bf16.mxu0 0
        %910 = vmatpush1.bf16.msra.mxu0 0
        %911 = vmatprep.subr.bf16.mxu0 0
        %912 = vmatpush1.bf16.msra.mxu0 0
        %913 = vmatprep.subr.bf16.mxu0 0
        %914 = vmatpush1.bf16.msra.mxu0 0
        %915 = vmatprep.subr.bf16.mxu0 0
        %916 = vmatpush1.bf16.msra.mxu0 %v896
        %917 = vmatprep.subr.bf16.mxu0 0
        %918 = vmatpush1.bf16.msra.mxu0 %v895
        %919 = vmatprep.subr.bf16.mxu0 0
        %920 = vmatpush1.bf16.msra.mxu0 %v894
        %921 = vmatprep.subr.bf16.mxu0 0
        %922 = vmatpush1.bf16.msra.mxu0 %v893
        %923 = vmatprep.subr.bf16.mxu0 0
        %924 = vmatpush2.bf16.msra.mxu0 0
        %925 = vmatprep.subr.bf16.mxu0 0
        %926 = vmatpush2.bf16.msra.mxu0 0
        %927 = vmatprep.subr.bf16.mxu0 0
        %928 = vmatpush2.bf16.msra.mxu0 0
        %929 = vmatprep.subr.bf16.mxu0 0
        %930 = vmatpush2.bf16.msra.mxu0 0
        %931 = vmatprep.subr.bf16.mxu0 0
        %932 = vmatpush2.bf16.msra.mxu0 0
        %933 = vmatprep.subr.bf16.mxu0 0
        %934 = vmatpush2.bf16.msra.mxu0 0
        %935 = vmatprep.subr.bf16.mxu0 0
        %936 = vmatpush2.bf16.msra.mxu0 0
        %937 = vmatprep.subr.bf16.mxu0 0
        %938 = vmatpush2.bf16.msra.mxu0 0
        %939 = vmatprep.mubr.bf16.mxu0 0
        %940 = vmatmul.mubr.bf16.gmra.mxu0 %v902
        %v941 = vpop.f32.mrf.mxu0
        %v942 = vadd.f32 0.0, %v941
        %v943 = vpop.f32.mrf.mxu0
        %v944 = vpop.f32.mrf.mxu0
        %v945 = vadd.f32 0.0, %v944
        %v946 = vpop.f32.mrf.mxu0
        %947 = vmatprep.mubr.bf16.mxu0 0
        %948 = vmatmul.mubr.bf16.gmra.mxu0 %v905
        %v949 = vpop.f32.mrf.mxu0
        %v950 = vadd.f32 0.0, %v949
        %v951 = vpop.f32.mrf.mxu0
        %v952 = vpop.f32.mrf.mxu0
        %v953 = vpop.f32.mrf.mxu0
        %954 = vdwg.mxu0
        %v955 = vld [vmem:[%s9] sm:$0xf]
        %v956 = vld [vmem:[%s9 + $0x4] sm:$0xf]
        %v957 = vld [vmem:[%s9 + $0x8] sm:$0xf]
        %v958 = vld [vmem:[%s9 + $0xc] sm:$0xf]
        %v959 = vld [vmem:[%s9 + $0x10] sm:$0xf]
        %v960 = vld [vmem:[%s9 + $0x14] sm:$0xf]
        %v961 = vld [vmem:[%s9 + $0x18] sm:$0xf]
        %v962 = vld [vmem:[%s9 + $0x1c] sm:$0xf]
        %v971 = vunpack.c.l.b16 %v955
        %v972 = vunpack.c.l.b16 %v956
        %v973 = vunpack.c.l.b16 %v957
        %v974 = vunpack.c.l.b16 %v958
        %v975 = vunpack.c.l.b16 %v959
        %v976 = vunpack.c.l.b16 %v960
        %v977 = vunpack.c.l.b16 %v961
        %v978 = vunpack.c.l.b16 %v962
        %v979 = vpack.c.b16 %v972, %v971
        %v980 = vpack.c.b16 %v974, %v973
        %v981 = vpack.c.b16 %v976, %v975
        %v982 = vpack.c.b16 %v978, %v977
        %987 = vmatprep.subr.bf16.mxu0 0
        %988 = vmatpush1.bf16.msra.mxu0 0
        %989 = vmatprep.subr.bf16.mxu0 0
        %990 = vmatpush1.bf16.msra.mxu0 0
        %991 = vmatprep.subr.bf16.mxu0 0
        %992 = vmatpush1.bf16.msra.mxu0 0
        %993 = vmatprep.subr.bf16.mxu0 0
        %994 = vmatpush1.bf16.msra.mxu0 0
        %995 = vmatprep.subr.bf16.mxu0 0
        %996 = vmatpush1.bf16.msra.mxu0 %v982
        %997 = vmatprep.subr.bf16.mxu0 0
        %998 = vmatpush1.bf16.msra.mxu0 %v981
        %999 = vmatprep.subr.bf16.mxu0 0
        %1000 = vmatpush1.bf16.msra.mxu0 %v980
        %1001 = vmatprep.subr.bf16.mxu0 0
        %1002 = vmatpush1.bf16.msra.mxu0 %v979
        %1003 = vmatprep.subr.bf16.mxu0 0
        %1004 = vmatpush2.bf16.msra.mxu0 0
        %1005 = vmatprep.subr.bf16.mxu0 0
        %1006 = vmatpush2.bf16.msra.mxu0 0
        %1007 = vmatprep.subr.bf16.mxu0 0
        %1008 = vmatpush2.bf16.msra.mxu0 0
        %1009 = vmatprep.subr.bf16.mxu0 0
        %1010 = vmatpush2.bf16.msra.mxu0 0
        %1011 = vmatprep.subr.bf16.mxu0 0
        %1012 = vmatpush2.bf16.msra.mxu0 0
        %1013 = vmatprep.subr.bf16.mxu0 0
        %1014 = vmatpush2.bf16.msra.mxu0 0
        %1015 = vmatprep.subr.bf16.mxu0 0
        %1016 = vmatpush2.bf16.msra.mxu0 0
        %1017 = vmatprep.subr.bf16.mxu0 0
        %1018 = vmatpush2.bf16.msra.mxu0 0
        %1019 = vmatprep.mubr.bf16.mxu0 0
        %1020 = vmatmul.mubr.bf16.gmra.mxu0 %v902
        %v1021 = vpop.f32.mrf.mxu0
        %v1022 = vadd.f32 0.0, %v1021
        %v1023 = vpop.f32.mrf.mxu0
        %v1024 = vpop.f32.mrf.mxu0
        %v1025 = vadd.f32 0.0, %v1024
        %v1026 = vpop.f32.mrf.mxu0
        %1027 = vmatprep.mubr.bf16.mxu0 0
        %1028 = vmatmul.mubr.bf16.gmra.mxu0 %v905
        %v1029 = vpop.f32.mrf.mxu0
        %v1030 = vadd.f32 0.0, %v1029
        %v1031 = vpop.f32.mrf.mxu0
        %v1032 = vpop.f32.mrf.mxu0
        %v1033 = vpop.f32.mrf.mxu0
        %1034 = vdwg.mxu0
        %v1035 = vmul.f32 %v863, %v863
        %v1036 = vmul.f32 %v866, %v866
        %vm1037 = vcmask 261120
        %v1038 = vsel %vm1037, %v1035, 0.0
        %1039 = vadd.xlane.f32.xlu0 %v1038
        %v1040 = vpop.xlane.xlu0 %1039
        %v1041 = vsel %vm1037, %v1036, 0.0
        %1042 = vadd.xlane.f32.xlu0 %v1041
        %v1043 = vpop.xlane.xlu0 %1042
        %v1044 = vrcp.pop 32.0
        %v1045 = vmul.f32 %v1040, %v1044
        %v1046 = vmul.f32 %v1043, %v1044
        %v1047 = vmax.f32 %v1045, 1e-16
        %v1048 = vmax.f32 %v1046, 1e-16
        %v1049 = vrsqrt.pop %v1047
        %v1050 = vrsqrt.pop %v1048
        %v1051 = vmul.f32 %v863, %v1049
        %v1052 = vmul.f32 %v866, %v1050
        %v1053 = vld [vmem:[%s10] sm:$0x1]
        %v1055 = vlaneseq
        %v1056 = vshrl.u32 %v1055, 7
        %v1057 = vsub.s32 0, %v1056
        %v1058 = vrot.slane %v1053, %v1057
        %v1060 = vmul.f32 %v1051, %v1058
        %v1061 = vmul.f32 %v1052, %v1058
        %v1062 = vmul.f32 %v1060, 0.17677669
        %v1063 = vmul.f32 %v1061, 0.17677669
        %v1064 = vpack.c.bf16 %v1063, %v1062
        %v1065 = vmul.f32 %v942, %v942
        %v1066 = vmul.f32 %v945, %v945
        %v1067 = vmul.f32 %v950, %v950
        %v1068 = vsel %vm1037, %v1065, 0.0
        %1069 = vadd.xlane.f32.xlu0 %v1068
        %v1070 = vpop.xlane.xlu0 %1069
        %v1071 = vsel %vm1037, %v1066, 0.0
        %1072 = vadd.xlane.f32.xlu0 %v1071
        %v1073 = vpop.xlane.xlu0 %1072
        %v1074 = vsel %vm1037, %v1067, 0.0
        %1075 = vadd.xlane.f32.xlu0 %v1074
        %v1076 = vpop.xlane.xlu0 %1075
        %v1077 = vmul.f32 %v1070, %v1044
        %v1078 = vmul.f32 %v1073, %v1044
        %v1079 = vmul.f32 %v1076, %v1044
        %v1080 = vmax.f32 %v1077, 1e-16
        %v1081 = vmax.f32 %v1078, 1e-16
        %v1082 = vmax.f32 %v1079, 1e-16
        %v1083 = vrsqrt.pop %v1080
        %v1084 = vrsqrt.pop %v1081
        %v1085 = vrsqrt.pop %v1082
        %v1086 = vmul.f32 %v942, %v1083
        %v1087 = vmul.f32 %v945, %v1084
        %v1088 = vmul.f32 %v950, %v1085
        %v1089 = vld [vmem:[%s11] sm:$0x1]
        %v1091 = vlaneseq
        %v1092 = vshrl.u32 %v1091, 7
        %v1093 = vsub.s32 0, %v1092
        %v1094 = vrot.slane %v1089, %v1093
        %v1096 = vmul.f32 %v1086, %v1094
        %v1097 = vmul.f32 %v1087, %v1094
        %v1098 = vmul.f32 %v1088, %v1094
        %v1099 = vpack.c.bf16 %v1097, %v1096
        %v1100 = vpack.c.bf16 %v1098, %v1098
        %v1101 = vpack.c.bf16 %v1025, %v1022
        %v1102 = vpack.c.bf16 %v1030, %v1030
        %v1104 = vsel %vm1037, %v1064, 0
        %v1107 = vsel %vm1037, %v1099, 0
        %v1110 = vsel %vm1037, %v1100, 0
        %1112 = vmatprep.subr.bf16.mxu0 0
        %1113 = vmatpush1.bf16.xpose.msra.mxu0 0
        %1114 = vmatprep.subr.bf16.mxu0 0
        %1115 = vmatpush1.bf16.xpose.msra.mxu0 0
        %1116 = vmatprep.subr.bf16.mxu0 0
        %1117 = vmatpush1.bf16.xpose.msra.mxu0 0
        %1118 = vmatprep.subr.bf16.mxu0 0
        %1119 = vmatpush1.bf16.xpose.msra.mxu0 0
        %1120 = vmatprep.subr.bf16.mxu0 0
        %1121 = vmatpush1.bf16.xpose.msra.mxu0 0
        %1122 = vmatprep.subr.bf16.mxu0 0
        %1123 = vmatpush1.bf16.xpose.msra.mxu0 0
        %1124 = vmatprep.subr.bf16.mxu0 0
        %1125 = vmatpush1.bf16.xpose.msra.mxu0 %v1110
        %1126 = vmatprep.subr.bf16.mxu0 0
        %1127 = vmatpush1.bf16.xpose.msra.mxu0 %v1107
        %1128 = vmatprep.subr.bf16.mxu0 0
        %1129 = vmatpush2.bf16.xpose.msra.mxu0 0
        %1130 = vmatprep.subr.bf16.mxu0 0
        %1131 = vmatpush2.bf16.xpose.msra.mxu0 0
        %1132 = vmatprep.subr.bf16.mxu0 0
        %1133 = vmatpush2.bf16.xpose.msra.mxu0 0
        %1134 = vmatprep.subr.bf16.mxu0 0
        %1135 = vmatpush2.bf16.xpose.msra.mxu0 0
        %1136 = vmatprep.subr.bf16.mxu0 0
        %1137 = vmatpush2.bf16.xpose.msra.mxu0 0
        %1138 = vmatprep.subr.bf16.mxu0 0
        %1139 = vmatpush2.bf16.xpose.msra.mxu0 0
        %1140 = vmatprep.subr.bf16.mxu0 0
        %1141 = vmatpush2.bf16.xpose.msra.mxu0 0
        %1142 = vmatprep.subr.bf16.mxu0 0
        %1143 = vmatpush2.bf16.xpose.msra.mxu0 0
        %1144 = vmatprep.mubr.bf16.mxu0 0
        %1145 = vmatmul.mubr.bf16.gmra.mxu0 %v1104
        %v1146 = vpop.f32.mrf.mxu0
        %v1147 = vadd.f32 0.0, %v1146
        %v1148 = vpop.f32.mrf.mxu0
        %v1149 = vpop.f32.mrf.mxu0
        %v1150 = vadd.f32 0.0, %v1149
        %v1151 = vpop.f32.mrf.mxu0
        %1152 = vdwg.mxu0
        %vm1153 = vcmask 195584
        %v1154 = vsel %vm1153, %v1147, -inf
        %1155 = vmax.xlane.f32.xlu0 %v1154
        %v1156 = vpop.xlane.xlu0 %1155
        %v1157 = vsel %vm1153, %v1150, -inf
        %1158 = vmax.xlane.f32.xlu0 %v1157
        %v1159 = vpop.xlane.xlu0 %1158
        %v1160 = vsub.f32 %v1147, %v1156
        %v1161 = vsub.f32 %v1150, %v1159
        %v1162 = vmul.f32 %v1160, 1.442695
        %v1163 = vpow.pop %v1162
        %v1164 = vmul.f32 %v1161, 1.442695
        %v1165 = vpow.pop %v1164
        %v1166 = vsel %vm1153, %v1163, 0.0
        %1167 = vadd.xlane.f32.xlu0 %v1166
        %v1168 = vpop.xlane.xlu0 %1167
        %v1169 = vsel %vm1153, %v1165, 0.0
        %1170 = vadd.xlane.f32.xlu0 %v1169
        %v1171 = vpop.xlane.xlu0 %1170
        %v1172 = vrcp.pop %v1168
        %v1173 = vrcp.pop %v1171
        %v1174 = vmul.f32 %v1163, %v1172
        %v1175 = vmul.f32 %v1165, %v1173
        %v1176 = vpack.c.bf16 %v1175, %v1174
        %v1178 = vsel %vm1153, %v1176, 0
        %vm1180 = vcmask 1043456
        %v1182 = vsel %vm1180, %v1102, 0
        %1184 = vmatprep.subr.bf16.mxu0 0
        %1185 = vmatpush1.bf16.msra.mxu0 0
        %1186 = vmatprep.subr.bf16.mxu0 0
        %1187 = vmatpush1.bf16.msra.mxu0 0
        %1188 = vmatprep.subr.bf16.mxu0 0
        %1189 = vmatpush1.bf16.msra.mxu0 0
        %1190 = vmatprep.subr.bf16.mxu0 0
        %1191 = vmatpush1.bf16.msra.mxu0 0
        %1192 = vmatprep.subr.bf16.mxu0 0
        %1193 = vmatpush1.bf16.msra.mxu0 0
        %1194 = vmatprep.subr.bf16.mxu0 0
        %1195 = vmatpush1.bf16.msra.mxu0 0
        %1196 = vmatprep.subr.bf16.mxu0 0
        %1197 = vmatpush1.bf16.msra.mxu0 %v1182
        %1198 = vmatprep.subr.bf16.mxu0 0
        %1199 = vmatpush1.bf16.msra.mxu0 %v1101
        %1200 = vmatprep.subr.bf16.mxu0 0
        %1201 = vmatpush2.bf16.msra.mxu0 0
        %1202 = vmatprep.subr.bf16.mxu0 0
        %1203 = vmatpush2.bf16.msra.mxu0 0
        %1204 = vmatprep.subr.bf16.mxu0 0
        %1205 = vmatpush2.bf16.msra.mxu0 0
        %1206 = vmatprep.subr.bf16.mxu0 0
        %1207 = vmatpush2.bf16.msra.mxu0 0
        %1208 = vmatprep.subr.bf16.mxu0 0
        %1209 = vmatpush2.bf16.msra.mxu0 0
        %1210 = vmatprep.subr.bf16.mxu0 0
        %1211 = vmatpush2.bf16.msra.mxu0 0
        %1212 = vmatprep.subr.bf16.mxu0 0
        %1213 = vmatpush2.bf16.msra.mxu0 0
        %1214 = vmatprep.subr.bf16.mxu0 0
        %1215 = vmatpush2.bf16.msra.mxu0 0
        %1216 = vmatprep.mubr.bf16.mxu0 0
        %1217 = vmatmul.mubr.bf16.gmra.mxu0 %v1178
        %v1218 = vpop.f32.mrf.mxu0
        %v1219 = vadd.f32 0.0, %v1218
        %v1220 = vpop.f32.mrf.mxu0
        %v1221 = vpop.f32.mrf.mxu0
        %v1222 = vadd.f32 0.0, %v1221
        %v1223 = vpop.f32.mrf.mxu0
        %1224 = vdwg.mxu0
        %v1225 = vpack.c.bf16 %v1222, %v1219
        %v1226 = vld [vmem:[%s12] sm:$0xf]
        %v1227 = vld [vmem:[%s12 + $0x4] sm:$0xf]
        %v1228 = vld [vmem:[%s12 + $0x8] sm:$0xf]
        %v1229 = vld [vmem:[%s12 + $0xc] sm:$0xf]
        %v1234 = vunpack.c.l.b16 %v1226
        %v1235 = vunpack.c.l.b16 %v1227
        %v1236 = vunpack.c.l.b16 %v1228
        %v1237 = vunpack.c.l.b16 %v1229
        %v1238 = vpack.c.b16 %v1235, %v1234
        %v1239 = vpack.c.b16 %v1237, %v1236
        %v1243 = vsel %vm1037, %v1225, 0
        %1245 = vmatprep.subr.bf16.mxu0 0
        %1246 = vmatpush1.bf16.msra.mxu0 0
        %1247 = vmatprep.subr.bf16.mxu0 0
        %1248 = vmatpush1.bf16.msra.mxu0 0
        %1249 = vmatprep.subr.bf16.mxu0 0
        %1250 = vmatpush1.bf16.msra.mxu0 0
        %1251 = vmatprep.subr.bf16.mxu0 0
        %1252 = vmatpush1.bf16.msra.mxu0 0
        %1253 = vmatprep.subr.bf16.mxu0 0
        %1254 = vmatpush1.bf16.msra.mxu0 0
        %1255 = vmatprep.subr.bf16.mxu0 0
        %1256 = vmatpush1.bf16.msra.mxu0 0
        %1257 = vmatprep.subr.bf16.mxu0 0
        %1258 = vmatpush1.bf16.msra.mxu0 %v1239
        %1259 = vmatprep.subr.bf16.mxu0 0
        %1260 = vmatpush1.bf16.msra.mxu0 %v1238
        %1261 = vmatprep.subr.bf16.mxu0 0
        %1262 = vmatpush2.bf16.msra.mxu0 0
        %1263 = vmatprep.subr.bf16.mxu0 0
        %1264 = vmatpush2.bf16.msra.mxu0 0
        %1265 = vmatprep.subr.bf16.mxu0 0
        %1266 = vmatpush2.bf16.msra.mxu0 0
        %1267 = vmatprep.subr.bf16.mxu0 0
        %1268 = vmatpush2.bf16.msra.mxu0 0
        %1269 = vmatprep.subr.bf16.mxu0 0
        %1270 = vmatpush2.bf16.msra.mxu0 0
        %1271 = vmatprep.subr.bf16.mxu0 0
        %1272 = vmatpush2.bf16.msra.mxu0 0
        %1273 = vmatprep.subr.bf16.mxu0 0
        %1274 = vmatpush2.bf16.msra.mxu0 0
        %1275 = vmatprep.subr.bf16.mxu0 0
        %1276 = vmatpush2.bf16.msra.mxu0 0
        %1277 = vmatprep.mubr.bf16.mxu0 0
        %1278 = vmatmul.mubr.bf16.gmra.mxu0 %v1243
        %v1279 = vpop.f32.mrf.mxu0
        %v1280 = vadd.f32 0.0, %v1279
        %v1281 = vpop.f32.mrf.mxu0
        %v1282 = vpop.f32.mrf.mxu0
        %v1283 = vadd.f32 0.0, %v1282
        %v1284 = vpop.f32.mrf.mxu0
        %1285 = vdwg.mxu0
        %v1286 = vadd.f32 %v791, %v1280
        %v1287 = vadd.f32 %v792, %v1283
        %s1288 = scalar_lea.vmem %s7, 32
        %v1289 = vld [vmem:[%s1288] sm:$0xf]
        %v1290 = vld [vmem:[%s1288 + $0x4] sm:$0xf]
        %v1291 = vld [vmem:[%s1288 + $0x8] sm:$0xf]
        %v1292 = vld [vmem:[%s1288 + $0xc] sm:$0xf]
        %v1293 = vld [vmem:[%s1288 + $0x10] sm:$0xf]
        %v1294 = vld [vmem:[%s1288 + $0x14] sm:$0xf]
        %v1295 = vld [vmem:[%s1288 + $0x18] sm:$0xf]
        %v1296 = vld [vmem:[%s1288 + $0x1c] sm:$0xf]
        %v1305 = vunpack.c.l.b16 %v1289
        %v1306 = vunpack.c.l.b16 %v1290
        %v1307 = vunpack.c.l.b16 %v1291
        %v1308 = vunpack.c.l.b16 %v1292
        %v1309 = vunpack.c.l.b16 %v1293
        %v1310 = vunpack.c.l.b16 %v1294
        %v1311 = vunpack.c.l.b16 %v1295
        %v1312 = vunpack.c.l.b16 %v1296
        %v1313 = vpack.c.b16 %v1306, %v1305
        %v1314 = vpack.c.b16 %v1308, %v1307
        %v1315 = vpack.c.b16 %v1310, %v1309
        %v1316 = vpack.c.b16 %v1312, %v1311
        %1321 = vmatprep.subr.bf16.mxu0 0
        %1322 = vmatpush1.bf16.msra.mxu0 0
        %1323 = vmatprep.subr.bf16.mxu0 0
        %1324 = vmatpush1.bf16.msra.mxu0 0
        %1325 = vmatprep.subr.bf16.mxu0 0
        %1326 = vmatpush1.bf16.msra.mxu0 0
        %1327 = vmatprep.subr.bf16.mxu0 0
        %1328 = vmatpush1.bf16.msra.mxu0 0
        %1329 = vmatprep.subr.bf16.mxu0 0
        %1330 = vmatpush1.bf16.msra.mxu0 %v1316
        %1331 = vmatprep.subr.bf16.mxu0 0
        %1332 = vmatpush1.bf16.msra.mxu0 %v1315
        %1333 = vmatprep.subr.bf16.mxu0 0
        %1334 = vmatpush1.bf16.msra.mxu0 %v1314
        %1335 = vmatprep.subr.bf16.mxu0 0
        %1336 = vmatpush1.bf16.msra.mxu0 %v1313
        %1337 = vmatprep.subr.bf16.mxu0 0
        %1338 = vmatpush2.bf16.msra.mxu0 0
        %1339 = vmatprep.subr.bf16.mxu0 0
        %1340 = vmatpush2.bf16.msra.mxu0 0
        %1341 = vmatprep.subr.bf16.mxu0 0
        %1342 = vmatpush2.bf16.msra.mxu0 0
        %1343 = vmatprep.subr.bf16.mxu0 0
        %1344 = vmatpush2.bf16.msra.mxu0 0
        %1345 = vmatprep.subr.bf16.mxu0 0
        %1346 = vmatpush2.bf16.msra.mxu0 0
        %1347 = vmatprep.subr.bf16.mxu0 0
        %1348 = vmatpush2.bf16.msra.mxu0 0
        %1349 = vmatprep.subr.bf16.mxu0 0
        %1350 = vmatpush2.bf16.msra.mxu0 0
        %1351 = vmatprep.subr.bf16.mxu0 0
        %1352 = vmatpush2.bf16.msra.mxu0 0
        %1353 = vmatprep.mubr.bf16.mxu0 0
        %1354 = vmatmul.mubr.bf16.gmra.mxu0 %v826
        %v1355 = vpop.f32.mrf.mxu0
        %v1356 = vadd.f32 0.0, %v1355
        %v1357 = vpop.f32.mrf.mxu0
        %v1358 = vpop.f32.mrf.mxu0
        %v1359 = vadd.f32 0.0, %v1358
        %v1360 = vpop.f32.mrf.mxu0
        %1361 = vdwg.mxu0
        %s1362 = scalar_lea.vmem %s8, 32
        %v1363 = vld [vmem:[%s1362] sm:$0xf]
        %v1364 = vld [vmem:[%s1362 + $0x4] sm:$0xf]
        %v1365 = vld [vmem:[%s1362 + $0x8] sm:$0xf]
        %v1366 = vld [vmem:[%s1362 + $0xc] sm:$0xf]
        %v1367 = vld [vmem:[%s1362 + $0x10] sm:$0xf]
        %v1368 = vld [vmem:[%s1362 + $0x14] sm:$0xf]
        %v1369 = vld [vmem:[%s1362 + $0x18] sm:$0xf]
        %v1370 = vld [vmem:[%s1362 + $0x1c] sm:$0xf]
        %v1379 = vunpack.c.l.b16 %v1363
        %v1380 = vunpack.c.l.b16 %v1364
        %v1381 = vunpack.c.l.b16 %v1365
        %v1382 = vunpack.c.l.b16 %v1366
        %v1383 = vunpack.c.l.b16 %v1367
        %v1384 = vunpack.c.l.b16 %v1368
        %v1385 = vunpack.c.l.b16 %v1369
        %v1386 = vunpack.c.l.b16 %v1370
        %v1387 = vpack.c.b16 %v1380, %v1379
        %v1388 = vpack.c.b16 %v1382, %v1381
        %v1389 = vpack.c.b16 %v1384, %v1383
        %v1390 = vpack.c.b16 %v1386, %v1385
        %1395 = vmatprep.subr.bf16.mxu0 0
        %1396 = vmatpush1.bf16.msra.mxu0 0
        %1397 = vmatprep.subr.bf16.mxu0 0
        %1398 = vmatpush1.bf16.msra.mxu0 0
        %1399 = vmatprep.subr.bf16.mxu0 0
        %1400 = vmatpush1.bf16.msra.mxu0 0
        %1401 = vmatprep.subr.bf16.mxu0 0
        %1402 = vmatpush1.bf16.msra.mxu0 0
        %1403 = vmatprep.subr.bf16.mxu0 0
        %1404 = vmatpush1.bf16.msra.mxu0 %v1390
        %1405 = vmatprep.subr.bf16.mxu0 0
        %1406 = vmatpush1.bf16.msra.mxu0 %v1389
        %1407 = vmatprep.subr.bf16.mxu0 0
        %1408 = vmatpush1.bf16.msra.mxu0 %v1388
        %1409 = vmatprep.subr.bf16.mxu0 0
        %1410 = vmatpush1.bf16.msra.mxu0 %v1387
        %1411 = vmatprep.subr.bf16.mxu0 0
        %1412 = vmatpush2.bf16.msra.mxu0 0
        %1413 = vmatprep.subr.bf16.mxu0 0
        %1414 = vmatpush2.bf16.msra.mxu0 0
        %1415 = vmatprep.subr.bf16.mxu0 0
        %1416 = vmatpush2.bf16.msra.mxu0 0
        %1417 = vmatprep.subr.bf16.mxu0 0
        %1418 = vmatpush2.bf16.msra.mxu0 0
        %1419 = vmatprep.subr.bf16.mxu0 0
        %1420 = vmatpush2.bf16.msra.mxu0 0
        %1421 = vmatprep.subr.bf16.mxu0 0
        %1422 = vmatpush2.bf16.msra.mxu0 0
        %1423 = vmatprep.subr.bf16.mxu0 0
        %1424 = vmatpush2.bf16.msra.mxu0 0
        %1425 = vmatprep.subr.bf16.mxu0 0
        %1426 = vmatpush2.bf16.msra.mxu0 0
        %1427 = vmatprep.mubr.bf16.mxu0 0
        %1428 = vmatmul.mubr.bf16.gmra.mxu0 %v902
        %v1429 = vpop.f32.mrf.mxu0
        %v1430 = vadd.f32 0.0, %v1429
        %v1431 = vpop.f32.mrf.mxu0
        %v1432 = vpop.f32.mrf.mxu0
        %v1433 = vadd.f32 0.0, %v1432
        %v1434 = vpop.f32.mrf.mxu0
        %1435 = vmatprep.mubr.bf16.mxu0 0
        %1436 = vmatmul.mubr.bf16.gmra.mxu0 %v905
        %v1437 = vpop.f32.mrf.mxu0
        %v1438 = vadd.f32 0.0, %v1437
        %v1439 = vpop.f32.mrf.mxu0
        %v1440 = vpop.f32.mrf.mxu0
        %v1441 = vpop.f32.mrf.mxu0
        %1442 = vdwg.mxu0
        %s1443 = scalar_lea.vmem %s9, 32
        %v1444 = vld [vmem:[%s1443] sm:$0xf]
        %v1445 = vld [vmem:[%s1443 + $0x4] sm:$0xf]
        %v1446 = vld [vmem:[%s1443 + $0x8] sm:$0xf]
        %v1447 = vld [vmem:[%s1443 + $0xc] sm:$0xf]
        %v1448 = vld [vmem:[%s1443 + $0x10] sm:$0xf]
        %v1449 = vld [vmem:[%s1443 + $0x14] sm:$0xf]
        %v1450 = vld [vmem:[%s1443 + $0x18] sm:$0xf]
        %v1451 = vld [vmem:[%s1443 + $0x1c] sm:$0xf]
        %v1460 = vunpack.c.l.b16 %v1444
        %v1461 = vunpack.c.l.b16 %v1445
        %v1462 = vunpack.c.l.b16 %v1446
        %v1463 = vunpack.c.l.b16 %v1447
        %v1464 = vunpack.c.l.b16 %v1448
        %v1465 = vunpack.c.l.b16 %v1449
        %v1466 = vunpack.c.l.b16 %v1450
        %v1467 = vunpack.c.l.b16 %v1451
        %v1468 = vpack.c.b16 %v1461, %v1460
        %v1469 = vpack.c.b16 %v1463, %v1462
        %v1470 = vpack.c.b16 %v1465, %v1464
        %v1471 = vpack.c.b16 %v1467, %v1466
        %1476 = vmatprep.subr.bf16.mxu0 0
        %1477 = vmatpush1.bf16.msra.mxu0 0
        %1478 = vmatprep.subr.bf16.mxu0 0
        %1479 = vmatpush1.bf16.msra.mxu0 0
        %1480 = vmatprep.subr.bf16.mxu0 0
        %1481 = vmatpush1.bf16.msra.mxu0 0
        %1482 = vmatprep.subr.bf16.mxu0 0
        %1483 = vmatpush1.bf16.msra.mxu0 0
        %1484 = vmatprep.subr.bf16.mxu0 0
        %1485 = vmatpush1.bf16.msra.mxu0 %v1471
        %1486 = vmatprep.subr.bf16.mxu0 0
        %1487 = vmatpush1.bf16.msra.mxu0 %v1470
        %1488 = vmatprep.subr.bf16.mxu0 0
        %1489 = vmatpush1.bf16.msra.mxu0 %v1469
        %1490 = vmatprep.subr.bf16.mxu0 0
        %1491 = vmatpush1.bf16.msra.mxu0 %v1468
        %1492 = vmatprep.subr.bf16.mxu0 0
        %1493 = vmatpush2.bf16.msra.mxu0 0
        %1494 = vmatprep.subr.bf16.mxu0 0
        %1495 = vmatpush2.bf16.msra.mxu0 0
        %1496 = vmatprep.subr.bf16.mxu0 0
        %1497 = vmatpush2.bf16.msra.mxu0 0
        %1498 = vmatprep.subr.bf16.mxu0 0
        %1499 = vmatpush2.bf16.msra.mxu0 0
        %1500 = vmatprep.subr.bf16.mxu0 0
        %1501 = vmatpush2.bf16.msra.mxu0 0
        %1502 = vmatprep.subr.bf16.mxu0 0
        %1503 = vmatpush2.bf16.msra.mxu0 0
        %1504 = vmatprep.subr.bf16.mxu0 0
        %1505 = vmatpush2.bf16.msra.mxu0 0
        %1506 = vmatprep.subr.bf16.mxu0 0
        %1507 = vmatpush2.bf16.msra.mxu0 0
        %1508 = vmatprep.mubr.bf16.mxu0 0
        %1509 = vmatmul.mubr.bf16.gmra.mxu0 %v902
        %v1510 = vpop.f32.mrf.mxu0
        %v1511 = vadd.f32 0.0, %v1510
        %v1512 = vpop.f32.mrf.mxu0
        %v1513 = vpop.f32.mrf.mxu0
        %v1514 = vadd.f32 0.0, %v1513
        %v1515 = vpop.f32.mrf.mxu0
        %1516 = vmatprep.mubr.bf16.mxu0 0
        %1517 = vmatmul.mubr.bf16.gmra.mxu0 %v905
        %v1518 = vpop.f32.mrf.mxu0
        %v1519 = vadd.f32 0.0, %v1518
        %v1520 = vpop.f32.mrf.mxu0
        %v1521 = vpop.f32.mrf.mxu0
        %v1522 = vpop.f32.mrf.mxu0
        %1523 = vdwg.mxu0
        %v1524 = vmul.f32 %v1356, %v1356
        %v1525 = vmul.f32 %v1359, %v1359
        %v1526 = vsel %vm1037, %v1524, 0.0
        %1527 = vadd.xlane.f32.xlu0 %v1526
        %v1528 = vpop.xlane.xlu0 %1527
        %v1529 = vsel %vm1037, %v1525, 0.0
        %1530 = vadd.xlane.f32.xlu0 %v1529
        %v1531 = vpop.xlane.xlu0 %1530
        %v1532 = vmul.f32 %v1528, %v1044
        %v1533 = vmul.f32 %v1531, %v1044
        %v1534 = vmax.f32 %v1532, 1e-16
        %v1535 = vmax.f32 %v1533, 1e-16
        %v1536 = vrsqrt.pop %v1534
        %v1537 = vrsqrt.pop %v1535
        %v1538 = vmul.f32 %v1356, %v1536
        %v1539 = vmul.f32 %v1359, %v1537
        %v1540 = vld [vmem:[%s10] sm:$0x1]
        %v1542 = vlaneseq
        %v1543 = vshrl.u32 %v1542, 7
        %v1544 = vsub.s32 0, %v1543
        %v1545 = vrot.slane %v1540, %v1544
        %v1547 = vmul.f32 %v1538, %v1545
        %v1548 = vmul.f32 %v1539, %v1545
        %v1549 = vmul.f32 %v1547, 0.17677669
        %v1550 = vmul.f32 %v1548, 0.17677669
        %v1551 = vpack.c.bf16 %v1550, %v1549
        %v1552 = vmul.f32 %v1430, %v1430
        %v1553 = vmul.f32 %v1433, %v1433
        %v1554 = vmul.f32 %v1438, %v1438
        %v1555 = vsel %vm1037, %v1552, 0.0
        %1556 = vadd.xlane.f32.xlu0 %v1555
        %v1557 = vpop.xlane.xlu0 %1556
        %v1558 = vsel %vm1037, %v1553, 0.0
        %1559 = vadd.xlane.f32.xlu0 %v1558
        %v1560 = vpop.xlane.xlu0 %1559
        %v1561 = vsel %vm1037, %v1554, 0.0
        %1562 = vadd.xlane.f32.xlu0 %v1561
        %v1563 = vpop.xlane.xlu0 %1562
        %v1564 = vmul.f32 %v1557, %v1044
        %v1565 = vmul.f32 %v1560, %v1044
        %v1566 = vmul.f32 %v1563, %v1044
        %v1567 = vmax.f32 %v1564, 1e-16
        %v1568 = vmax.f32 %v1565, 1e-16
        %v1569 = vmax.f32 %v1566, 1e-16
        %v1570 = vrsqrt.pop %v1567
        %v1571 = vrsqrt.pop %v1568
        %v1572 = vrsqrt.pop %v1569
        %v1573 = vmul.f32 %v1430, %v1570
        %v1574 = vmul.f32 %v1433, %v1571
        %v1575 = vmul.f32 %v1438, %v1572
        %v1576 = vld [vmem:[%s11] sm:$0x1]
        %v1578 = vlaneseq
        %v1579 = vshrl.u32 %v1578, 7
        %v1580 = vsub.s32 0, %v1579
        %v1581 = vrot.slane %v1576, %v1580
        %v1583 = vmul.f32 %v1573, %v1581
        %v1584 = vmul.f32 %v1574, %v1581
        %v1585 = vmul.f32 %v1575, %v1581
        %v1586 = vpack.c.bf16 %v1584, %v1583
        %v1587 = vpack.c.bf16 %v1585, %v1585
        %v1588 = vpack.c.bf16 %v1514, %v1511
        %v1589 = vpack.c.bf16 %v1519, %v1519
        %v1591 = vsel %vm1037, %v1551, 0
        %v1594 = vsel %vm1037, %v1586, 0
        %v1597 = vsel %vm1037, %v1587, 0
        %1599 = vmatprep.subr.bf16.mxu0 0
        %1600 = vmatpush1.bf16.xpose.msra.mxu0 0
        %1601 = vmatprep.subr.bf16.mxu0 0
        %1602 = vmatpush1.bf16.xpose.msra.mxu0 0
        %1603 = vmatprep.subr.bf16.mxu0 0
        %1604 = vmatpush1.bf16.xpose.msra.mxu0 0
        %1605 = vmatprep.subr.bf16.mxu0 0
        %1606 = vmatpush1.bf16.xpose.msra.mxu0 0
        %1607 = vmatprep.subr.bf16.mxu0 0
        %1608 = vmatpush1.bf16.xpose.msra.mxu0 0
        %1609 = vmatprep.subr.bf16.mxu0 0
        %1610 = vmatpush1.bf16.xpose.msra.mxu0 0
        %1611 = vmatprep.subr.bf16.mxu0 0
        %1612 = vmatpush1.bf16.xpose.msra.mxu0 %v1597
        %1613 = vmatprep.subr.bf16.mxu0 0
        %1614 = vmatpush1.bf16.xpose.msra.mxu0 %v1594
        %1615 = vmatprep.subr.bf16.mxu0 0
        %1616 = vmatpush2.bf16.xpose.msra.mxu0 0
        %1617 = vmatprep.subr.bf16.mxu0 0
        %1618 = vmatpush2.bf16.xpose.msra.mxu0 0
        %1619 = vmatprep.subr.bf16.mxu0 0
        %1620 = vmatpush2.bf16.xpose.msra.mxu0 0
        %1621 = vmatprep.subr.bf16.mxu0 0
        %1622 = vmatpush2.bf16.xpose.msra.mxu0 0
        %1623 = vmatprep.subr.bf16.mxu0 0
        %1624 = vmatpush2.bf16.xpose.msra.mxu0 0
        %1625 = vmatprep.subr.bf16.mxu0 0
        %1626 = vmatpush2.bf16.xpose.msra.mxu0 0
        %1627 = vmatprep.subr.bf16.mxu0 0
        %1628 = vmatpush2.bf16.xpose.msra.mxu0 0
        %1629 = vmatprep.subr.bf16.mxu0 0
        %1630 = vmatpush2.bf16.xpose.msra.mxu0 0
        %1631 = vmatprep.mubr.bf16.mxu0 0
        %1632 = vmatmul.mubr.bf16.gmra.mxu0 %v1591
        %v1633 = vpop.f32.mrf.mxu0
        %v1634 = vadd.f32 0.0, %v1633
        %v1635 = vpop.f32.mrf.mxu0
        %v1636 = vpop.f32.mrf.mxu0
        %v1637 = vadd.f32 0.0, %v1636
        %v1638 = vpop.f32.mrf.mxu0
        %1639 = vdwg.mxu0
        %v1640 = vsel %vm1153, %v1634, -inf
        %1641 = vmax.xlane.f32.xlu0 %v1640
        %v1642 = vpop.xlane.xlu0 %1641
        %v1643 = vsel %vm1153, %v1637, -inf
        %1644 = vmax.xlane.f32.xlu0 %v1643
        %v1645 = vpop.xlane.xlu0 %1644
        %v1646 = vsub.f32 %v1634, %v1642
        %v1647 = vsub.f32 %v1637, %v1645
        %v1648 = vmul.f32 %v1646, 1.442695
        %v1649 = vpow.pop %v1648
        %v1650 = vmul.f32 %v1647, 1.442695
        %v1651 = vpow.pop %v1650
        %v1652 = vsel %vm1153, %v1649, 0.0
        %1653 = vadd.xlane.f32.xlu0 %v1652
        %v1654 = vpop.xlane.xlu0 %1653
        %v1655 = vsel %vm1153, %v1651, 0.0
        %1656 = vadd.xlane.f32.xlu0 %v1655
        %v1657 = vpop.xlane.xlu0 %1656
        %v1658 = vrcp.pop %v1654
        %v1659 = vrcp.pop %v1657
        %v1660 = vmul.f32 %v1649, %v1658
        %v1661 = vmul.f32 %v1651, %v1659
        %v1662 = vpack.c.bf16 %v1661, %v1660
        %v1664 = vsel %vm1153, %v1662, 0
        %v1667 = vsel %vm1180, %v1589, 0
        %1669 = vmatprep.subr.bf16.mxu0 0
        %1670 = vmatpush1.bf16.msra.mxu0 0
        %1671 = vmatprep.subr.bf16.mxu0 0
        %1672 = vmatpush1.bf16.msra.mxu0 0
        %1673 = vmatprep.subr.bf16.mxu0 0
        %1674 = vmatpush1.bf16.msra.mxu0 0
        %1675 = vmatprep.subr.bf16.mxu0 0
        %1676 = vmatpush1.bf16.msra.mxu0 0
        %1677 = vmatprep.subr.bf16.mxu0 0
        %1678 = vmatpush1.bf16.msra.mxu0 0
        %1679 = vmatprep.subr.bf16.mxu0 0
        %1680 = vmatpush1.bf16.msra.mxu0 0
        %1681 = vmatprep.subr.bf16.mxu0 0
        %1682 = vmatpush1.bf16.msra.mxu0 %v1667
        %1683 = vmatprep.subr.bf16.mxu0 0
        %1684 = vmatpush1.bf16.msra.mxu0 %v1588
        %1685 = vmatprep.subr.bf16.mxu0 0
        %1686 = vmatpush2.bf16.msra.mxu0 0
        %1687 = vmatprep.subr.bf16.mxu0 0
        %1688 = vmatpush2.bf16.msra.mxu0 0
        %1689 = vmatprep.subr.bf16.mxu0 0
        %1690 = vmatpush2.bf16.msra.mxu0 0
        %1691 = vmatprep.subr.bf16.mxu0 0
        %1692 = vmatpush2.bf16.msra.mxu0 0
        %1693 = vmatprep.subr.bf16.mxu0 0
        %1694 = vmatpush2.bf16.msra.mxu0 0
        %1695 = vmatprep.subr.bf16.mxu0 0
        %1696 = vmatpush2.bf16.msra.mxu0 0
        %1697 = vmatprep.subr.bf16.mxu0 0
        %1698 = vmatpush2.bf16.msra.mxu0 0
        %1699 = vmatprep.subr.bf16.mxu0 0
        %1700 = vmatpush2.bf16.msra.mxu0 0
        %1701 = vmatprep.mubr.bf16.mxu0 0
        %1702 = vmatmul.mubr.bf16.gmra.mxu0 %v1664
        %v1703 = vpop.f32.mrf.mxu0
        %v1704 = vadd.f32 0.0, %v1703
        %v1705 = vpop.f32.mrf.mxu0
        %v1706 = vpop.f32.mrf.mxu0
        %v1707 = vadd.f32 0.0, %v1706
        %v1708 = vpop.f32.mrf.mxu0
        %1709 = vdwg.mxu0
        %v1710 = vpack.c.bf16 %v1707, %v1704
        %s1711 = scalar_lea.vmem %s12, 16
        %v1712 = vld [vmem:[%s1711] sm:$0xf]
        %v1713 = vld [vmem:[%s1711 + $0x4] sm:$0xf]
        %v1714 = vld [vmem:[%s1711 + $0x8] sm:$0xf]
        %v1715 = vld [vmem:[%s1711 + $0xc] sm:$0xf]
        %v1720 = vunpack.c.l.b16 %v1712
        %v1721 = vunpack.c.l.b16 %v1713
        %v1722 = vunpack.c.l.b16 %v1714
        %v1723 = vunpack.c.l.b16 %v1715
        %v1724 = vpack.c.b16 %v1721, %v1720
        %v1725 = vpack.c.b16 %v1723, %v1722
        %v1729 = vsel %vm1037, %v1710, 0
        %1731 = vmatprep.subr.bf16.mxu0 0
        %1732 = vmatpush1.bf16.msra.mxu0 0
        %1733 = vmatprep.subr.bf16.mxu0 0
        %1734 = vmatpush1.bf16.msra.mxu0 0
        %1735 = vmatprep.subr.bf16.mxu0 0
        %1736 = vmatpush1.bf16.msra.mxu0 0
        %1737 = vmatprep.subr.bf16.mxu0 0
        %1738 = vmatpush1.bf16.msra.mxu0 0
        %1739 = vmatprep.subr.bf16.mxu0 0
        %1740 = vmatpush1.bf16.msra.mxu0 0
        %1741 = vmatprep.subr.bf16.mxu0 0
        %1742 = vmatpush1.bf16.msra.mxu0 0
        %1743 = vmatprep.subr.bf16.mxu0 0
        %1744 = vmatpush1.bf16.msra.mxu0 %v1725
        %1745 = vmatprep.subr.bf16.mxu0 0
        %1746 = vmatpush1.bf16.msra.mxu0 %v1724
        %1747 = vmatprep.subr.bf16.mxu0 0
        %1748 = vmatpush2.bf16.msra.mxu0 0
        %1749 = vmatprep.subr.bf16.mxu0 0
        %1750 = vmatpush2.bf16.msra.mxu0 0
        %1751 = vmatprep.subr.bf16.mxu0 0
        %1752 = vmatpush2.bf16.msra.mxu0 0
        %1753 = vmatprep.subr.bf16.mxu0 0
        %1754 = vmatpush2.bf16.msra.mxu0 0
        %1755 = vmatprep.subr.bf16.mxu0 0
        %1756 = vmatpush2.bf16.msra.mxu0 0
        %1757 = vmatprep.subr.bf16.mxu0 0
        %1758 = vmatpush2.bf16.msra.mxu0 0
        %1759 = vmatprep.subr.bf16.mxu0 0
        %1760 = vmatpush2.bf16.msra.mxu0 0
        %1761 = vmatprep.subr.bf16.mxu0 0
        %1762 = vmatpush2.bf16.msra.mxu0 0
        %1763 = vmatprep.mubr.bf16.mxu0 0
        %1764 = vmatmul.mubr.bf16.gmra.mxu0 %v1729
        %v1765 = vpop.f32.mrf.mxu0
        %v1766 = vadd.f32 0.0, %v1765
        %v1767 = vpop.f32.mrf.mxu0
        %v1768 = vpop.f32.mrf.mxu0
        %v1769 = vadd.f32 0.0, %v1768
        %v1770 = vpop.f32.mrf.mxu0
        %1771 = vdwg.mxu0
        %v1772 = vadd.f32 %v1286, %v1766
        %v1773 = vadd.f32 %v1287, %v1769
        %v1774 = vsel %vm706, %v1772, 0.0
        %1775 = vadd.xlane.f32.xlu0 %v1774
        %v1776 = vpop.xlane.xlu0 %1775
        %v1777 = vsel %vm706, %v1773, 0.0
        %1778 = vadd.xlane.f32.xlu0 %v1777
        %v1779 = vpop.xlane.xlu0 %1778
        %v1780 = vmul.f32 %v1776, %v710
        %v1781 = vmul.f32 %v1779, %v710
        %v1782 = vsub.f32 %v1772, %v1780
        %v1783 = vsub.f32 %v1773, %v1781
        %v1784 = vmul.f32 %v1782, %v1782
        %v1785 = vmul.f32 %v1783, %v1783
        %v1786 = vsel %vm706, %v1784, 0.0
        %1787 = vadd.xlane.f32.xlu0 %v1786
        %v1788 = vpop.xlane.xlu0 %1787
        %v1789 = vsel %vm706, %v1785, 0.0
        %1790 = vadd.xlane.f32.xlu0 %v1789
        %v1791 = vpop.xlane.xlu0 %1790
        %v1792 = vmul.f32 %v1788, %v710
        %v1793 = vmul.f32 %v1791, %v710
        %v1794 = vadd.f32 %v1792, 1e-05
        %v1795 = vadd.f32 %v1793, 1e-05
        %v1796 = vrsqrt.pop %v1794
        %v1797 = vrsqrt.pop %v1795
        %v1798 = vmul.f32 %v1782, %v1796
        %v1799 = vmul.f32 %v1783, %v1797
        %v1800 = vld [vmem:[%s14] sm:$0x1]
        %v1802 = vlaneseq
        %v1803 = vshrl.u32 %v1802, 7
        %v1804 = vsub.s32 0, %v1803
        %v1805 = vrot.slane %v1800, %v1804
        %v1807 = vmul.f32 %v1798, %v1805
        %v1808 = vmul.f32 %v1799, %v1805
        %v1809 = vld [vmem:[%s15] sm:$0x1]
        %v1811 = vlaneseq
        %v1812 = vshrl.u32 %v1811, 7
        %v1813 = vsub.s32 0, %v1812
        %v1814 = vrot.slane %v1809, %v1813
        %v1816 = vadd.f32 %v1807, %v1814
        %v1817 = vadd.f32 %v1808, %v1814
        %v1818 = vpack.c.bf16 %v1817, %v1816
        %v1819 = vld [vmem:[%s16] sm:$0xff]
        %v1820 = vld [vmem:[%s16 + $0x8] sm:$0xff]
        %v1821 = vld [vmem:[%s16 + $0x10] sm:$0xff]
        %v1822 = vld [vmem:[%s16 + $0x18] sm:$0xff]
        %v1823 = vld [vmem:[%s16 + $0x20] sm:$0xff]
        %v1824 = vld [vmem:[%s16 + $0x28] sm:$0xff]
        %v1825 = vld [vmem:[%s16 + $0x30] sm:$0xff]
        %v1826 = vld [vmem:[%s16 + $0x38] sm:$0xff]
        %v1827 = vld [vmem:[%s17] sm:$0x3]
        %v1829 = vlaneseq
        %v1830 = vshrl.u32 %v1829, 7
        %v1831 = vsub.s32 0, %v1830
        %v1832 = vrot.slane %v1827, %v1831
        %v1833 = vlaneseq
        %v1834 = vshrl.u32 %v1833, 7
        %v1835 = vsub.s32 1, %v1834
        %v1836 = vrot.slane %v1827, %v1835
        %v1847 = vunpack.c.l.b16 %v1819
        %v1848 = vunpack.c.h.b16 %v1819
        %v1849 = vunpack.c.l.b16 %v1820
        %v1850 = vunpack.c.h.b16 %v1820
        %v1851 = vunpack.c.l.b16 %v1821
        %v1852 = vunpack.c.h.b16 %v1821
        %v1853 = vunpack.c.l.b16 %v1822
        %v1854 = vunpack.c.h.b16 %v1822
        %v1855 = vunpack.c.l.b16 %v1823
        %v1856 = vunpack.c.h.b16 %v1823
        %v1857 = vunpack.c.l.b16 %v1824
        %v1858 = vunpack.c.h.b16 %v1824
        %v1859 = vunpack.c.l.b16 %v1825
        %v1860 = vunpack.c.h.b16 %v1825
        %v1861 = vunpack.c.l.b16 %v1826
        %v1862 = vunpack.c.h.b16 %v1826
        %v1863 = vpack.c.b16 %v1849, %v1847
        %v1864 = vpack.c.b16 %v1850, %v1848
        %v1865 = vpack.c.b16 %v1853, %v1851
        %v1866 = vpack.c.b16 %v1854, %v1852
        %v1867 = vpack.c.b16 %v1857, %v1855
        %v1868 = vpack.c.b16 %v1858, %v1856
        %v1869 = vpack.c.b16 %v1861, %v1859
        %v1870 = vpack.c.b16 %v1862, %v1860
        %v1880 = vsel %vm706, %v1818, 0
        %1882 = vmatprep.subr.bf16.mxu0 0
        %1883 = vmatpush1.bf16.msra.mxu0 0
        %1884 = vmatprep.subr.bf16.mxu0 0
        %1885 = vmatpush1.bf16.msra.mxu0 0
        %1886 = vmatprep.subr.bf16.mxu0 0
        %1887 = vmatpush1.bf16.msra.mxu0 0
        %1888 = vmatprep.subr.bf16.mxu0 0
        %1889 = vmatpush1.bf16.msra.mxu0 0
        %1890 = vmatprep.subr.bf16.mxu0 %v1870
        %1891 = vmatpush1.bf16.msra.mxu0 %v1869
        %1892 = vmatprep.subr.bf16.mxu0 %v1868
        %1893 = vmatpush1.bf16.msra.mxu0 %v1867
        %1894 = vmatprep.subr.bf16.mxu0 %v1866
        %1895 = vmatpush1.bf16.msra.mxu0 %v1865
        %1896 = vmatprep.subr.bf16.mxu0 %v1864
        %1897 = vmatpush1.bf16.msra.mxu0 %v1863
        %1898 = vmatprep.subr.bf16.mxu0 0
        %1899 = vmatpush2.bf16.msra.mxu0 0
        %1900 = vmatprep.subr.bf16.mxu0 0
        %1901 = vmatpush2.bf16.msra.mxu0 0
        %1902 = vmatprep.subr.bf16.mxu0 0
        %1903 = vmatpush2.bf16.msra.mxu0 0
        %1904 = vmatprep.subr.bf16.mxu0 0
        %1905 = vmatpush2.bf16.msra.mxu0 0
        %1906 = vmatprep.subr.bf16.mxu0 0
        %1907 = vmatpush2.bf16.msra.mxu0 0
        %1908 = vmatprep.subr.bf16.mxu0 0
        %1909 = vmatpush2.bf16.msra.mxu0 0
        %1910 = vmatprep.subr.bf16.mxu0 0
        %1911 = vmatpush2.bf16.msra.mxu0 0
        %1912 = vmatprep.subr.bf16.mxu0 0
        %1913 = vmatpush2.bf16.msra.mxu0 0
        %1914 = vmatprep.mubr.bf16.mxu0 0
        %1915 = vmatmul.mubr.bf16.gmra.mxu0 %v1880
        %v1916 = vpop.f32.mrf.mxu0
        %v1917 = vadd.f32 %v1832, %v1916
        %v1918 = vpop.f32.mrf.mxu0
        %v1919 = vadd.f32 %v1836, %v1918
        %v1920 = vpop.f32.mrf.mxu0
        %v1921 = vadd.f32 %v1832, %v1920
        %v1922 = vpop.f32.mrf.mxu0
        %v1923 = vadd.f32 %v1836, %v1922
        %1924 = vdwg.mxu0
        %v1925 = vmul.f32 %v1917, 0.5
        %v1926 = vmul.f32 %v1919, 0.5
        %v1927 = vmul.f32 %v1921, 0.5
        %v1928 = vmul.f32 %v1923, 0.5
        %v1929 = vmul.f32 %v1917, 0.044715
        %v1930 = vmul.f32 %v1919, 0.044715
        %v1931 = vmul.f32 %v1921, 0.044715
        %v1932 = vmul.f32 %v1923, 0.044715
        %v1933 = vmul.f32 %v1929, %v1917
        %v1934 = vmul.f32 %v1930, %v1919
        %v1935 = vmul.f32 %v1931, %v1921
        %v1936 = vmul.f32 %v1932, %v1923
        %v1937 = vmul.f32 %v1933, %v1917
        %v1938 = vmul.f32 %v1934, %v1919
        %v1939 = vmul.f32 %v1935, %v1921
        %v1940 = vmul.f32 %v1936, %v1923
        %v1941 = vadd.f32 %v1917, %v1937
        %v1942 = vadd.f32 %v1919, %v1938
        %v1943 = vadd.f32 %v1921, %v1939
        %v1944 = vadd.f32 %v1923, %v1940
        %v1945 = vmul.f32 %v1941, 0.7978846
        %v1946 = vmul.f32 %v1942, 0.7978846
        %v1947 = vmul.f32 %v1943, 0.7978846
        %v1948 = vmul.f32 %v1944, 0.7978846
        %v1949 = vtanh.pop %v1945
        %v1950 = vtanh.pop %v1946
        %v1951 = vtanh.pop %v1947
        %v1952 = vtanh.pop %v1948
        %v1953 = vadd.f32 %v1949, 1.0
        %v1954 = vadd.f32 %v1950, 1.0
        %v1955 = vadd.f32 %v1951, 1.0
        %v1956 = vadd.f32 %v1952, 1.0
        %v1957 = vmul.f32 %v1925, %v1953
        %v1958 = vmul.f32 %v1926, %v1954
        %v1959 = vmul.f32 %v1927, %v1955
        %v1960 = vmul.f32 %v1928, %v1956
        %v1961 = vpack.c.bf16 %v1959, %v1957
        %v1962 = vpack.c.bf16 %v1960, %v1958
        %v1963 = vld [vmem:[%s18] sm:$0xf]
        %v1964 = vld [vmem:[%s18 + $0x4] sm:$0xf]
        %v1965 = vld [vmem:[%s18 + $0x8] sm:$0xf]
        %v1966 = vld [vmem:[%s18 + $0xc] sm:$0xf]
        %v1967 = vld [vmem:[%s18 + $0x10] sm:$0xf]
        %v1968 = vld [vmem:[%s18 + $0x14] sm:$0xf]
        %v1969 = vld [vmem:[%s18 + $0x18] sm:$0xf]
        %v1970 = vld [vmem:[%s18 + $0x1c] sm:$0xf]
        %v1971 = vld [vmem:[%s18 + $0x20] sm:$0xf]
        %v1972 = vld [vmem:[%s18 + $0x24] sm:$0xf]
        %v1973 = vld [vmem:[%s18 + $0x28] sm:$0xf]
        %v1974 = vld [vmem:[%s18 + $0x2c] sm:$0xf]
        %v1975 = vld [vmem:[%s18 + $0x30] sm:$0xf]
        %v1976 = vld [vmem:[%s18 + $0x34] sm:$0xf]
        %v1977 = vld [vmem:[%s18 + $0x38] sm:$0xf]
        %v1978 = vld [vmem:[%s18 + $0x3c] sm:$0xf]
        %v1979 = vld [vmem:[%s18 + $0x40] sm:$0xf]
        %v1980 = vld [vmem:[%s18 + $0x44] sm:$0xf]
        %v1981 = vld [vmem:[%s18 + $0x48] sm:$0xf]
        %v1982 = vld [vmem:[%s18 + $0x4c] sm:$0xf]
        %v1983 = vld [vmem:[%s18 + $0x50] sm:$0xf]
        %v1984 = vld [vmem:[%s18 + $0x54] sm:$0xf]
        %v1985 = vld [vmem:[%s18 + $0x58] sm:$0xf]
        %v1986 = vld [vmem:[%s18 + $0x5c] sm:$0xf]
        %v1987 = vld [vmem:[%s18 + $0x60] sm:$0xf]
        %v1988 = vld [vmem:[%s18 + $0x64] sm:$0xf]
        %v1989 = vld [vmem:[%s18 + $0x68] sm:$0xf]
        %v1990 = vld [vmem:[%s18 + $0x6c] sm:$0xf]
        %v1991 = vld [vmem:[%s18 + $0x70] sm:$0xf]
        %v1992 = vld [vmem:[%s18 + $0x74] sm:$0xf]
        %v1993 = vld [vmem:[%s18 + $0x78] sm:$0xf]
        %v1994 = vld [vmem:[%s18 + $0x7c] sm:$0xf]
        %v1995 = vld [vmem:[%s19] sm:$0x1]
        %v1997 = vlaneseq
        %v1998 = vshrl.u32 %v1997, 7
        %v1999 = vsub.s32 0, %v1998
        %v2000 = vrot.slane %v1995, %v1999
        %v2034 = vunpack.c.l.b16 %v1963
        %v2035 = vunpack.c.l.b16 %v1964
        %v2036 = vunpack.c.l.b16 %v1965
        %v2037 = vunpack.c.l.b16 %v1966
        %v2038 = vunpack.c.l.b16 %v1967
        %v2039 = vunpack.c.l.b16 %v1968
        %v2040 = vunpack.c.l.b16 %v1969
        %v2041 = vunpack.c.l.b16 %v1970
        %v2042 = vunpack.c.l.b16 %v1971
        %v2043 = vunpack.c.l.b16 %v1972
        %v2044 = vunpack.c.l.b16 %v1973
        %v2045 = vunpack.c.l.b16 %v1974
        %v2046 = vunpack.c.l.b16 %v1975
        %v2047 = vunpack.c.l.b16 %v1976
        %v2048 = vunpack.c.l.b16 %v1977
        %v2049 = vunpack.c.l.b16 %v1978
        %v2050 = vunpack.c.l.b16 %v1979
        %v2051 = vunpack.c.l.b16 %v1980
        %v2052 = vunpack.c.l.b16 %v1981
        %v2053 = vunpack.c.l.b16 %v1982
        %v2054 = vunpack.c.l.b16 %v1983
        %v2055 = vunpack.c.l.b16 %v1984
        %v2056 = vunpack.c.l.b16 %v1985
        %v2057 = vunpack.c.l.b16 %v1986
        %v2058 = vunpack.c.l.b16 %v1987
        %v2059 = vunpack.c.l.b16 %v1988
        %v2060 = vunpack.c.l.b16 %v1989
        %v2061 = vunpack.c.l.b16 %v1990
        %v2062 = vunpack.c.l.b16 %v1991
        %v2063 = vunpack.c.l.b16 %v1992
        %v2064 = vunpack.c.l.b16 %v1993
        %v2065 = vunpack.c.l.b16 %v1994
        %v2066 = vpack.c.b16 %v2035, %v2034
        %v2067 = vpack.c.b16 %v2037, %v2036
        %v2068 = vpack.c.b16 %v2039, %v2038
        %v2069 = vpack.c.b16 %v2041, %v2040
        %v2070 = vpack.c.b16 %v2043, %v2042
        %v2071 = vpack.c.b16 %v2045, %v2044
        %v2072 = vpack.c.b16 %v2047, %v2046
        %v2073 = vpack.c.b16 %v2049, %v2048
        %v2074 = vpack.c.b16 %v2051, %v2050
        %v2075 = vpack.c.b16 %v2053, %v2052
        %v2076 = vpack.c.b16 %v2055, %v2054
        %v2077 = vpack.c.b16 %v2057, %v2056
        %v2078 = vpack.c.b16 %v2059, %v2058
        %v2079 = vpack.c.b16 %v2061, %v2060
        %v2080 = vpack.c.b16 %v2063, %v2062
        %v2081 = vpack.c.b16 %v2065, %v2064
        %2098 = vmatprep.subr.bf16.mxu0 0
        %2099 = vmatpush1.bf16.msra.mxu0 %v2073
        %2100 = vmatprep.subr.bf16.mxu0 0
        %2101 = vmatpush1.bf16.msra.mxu0 %v2072
        %2102 = vmatprep.subr.bf16.mxu0 0
        %2103 = vmatpush1.bf16.msra.mxu0 %v2071
        %2104 = vmatprep.subr.bf16.mxu0 0
        %2105 = vmatpush1.bf16.msra.mxu0 %v2070
        %2106 = vmatprep.subr.bf16.mxu0 0
        %2107 = vmatpush1.bf16.msra.mxu0 %v2069
        %2108 = vmatprep.subr.bf16.mxu0 0
        %2109 = vmatpush1.bf16.msra.mxu0 %v2068
        %2110 = vmatprep.subr.bf16.mxu0 0
        %2111 = vmatpush1.bf16.msra.mxu0 %v2067
        %2112 = vmatprep.subr.bf16.mxu0 0
        %2113 = vmatpush1.bf16.msra.mxu0 %v2066
        %2114 = vmatprep.subr.bf16.mxu0 0
        %2115 = vmatpush2.bf16.msra.mxu0 %v2081
        %2116 = vmatprep.subr.bf16.mxu0 0
        %2117 = vmatpush2.bf16.msra.mxu0 %v2080
        %2118 = vmatprep.subr.bf16.mxu0 0
        %2119 = vmatpush2.bf16.msra.mxu0 %v2079
        %2120 = vmatprep.subr.bf16.mxu0 0
        %2121 = vmatpush2.bf16.msra.mxu0 %v2078
        %2122 = vmatprep.subr.bf16.mxu0 0
        %2123 = vmatpush2.bf16.msra.mxu0 %v2077
        %2124 = vmatprep.subr.bf16.mxu0 0
        %2125 = vmatpush2.bf16.msra.mxu0 %v2076
        %2126 = vmatprep.subr.bf16.mxu0 0
        %2127 = vmatpush2.bf16.msra.mxu0 %v2075
        %2128 = vmatprep.subr.bf16.mxu0 0
        %2129 = vmatpush2.bf16.msra.mxu0 %v2074
        %2130 = vmatprep.mubr.bf16.mxu0 %v1962
        %2131 = vmatmul.mubr.bf16.gmra.mxu0 %v1961
        %v2132 = vpop.f32.mrf.mxu0
        %v2133 = vadd.f32 %v2000, %v2132
        %v2134 = vpop.f32.mrf.mxu0
        %v2135 = vpop.f32.mrf.mxu0
        %v2136 = vadd.f32 %v2000, %v2135
        %v2137 = vpop.f32.mrf.mxu0
        %2138 = vdwg.mxu0
        %v2139 = vadd.f32 %v1772, %v2133
        %v2140 = vadd.f32 %v1773, %v2136
        %2141 = vst.msk [vmem:[%s689] sm:$0xff] %vm706, %v2139
        %2142 = vst.msk [vmem:[%s689 + $0x8] sm:$0xff] %vm706, %v2140
        %s2143 = sand.u32 %s516, 1
        %s2144 = scalar_lea.sflag [#allocation3], %s2143
        %s2145 = sand.u32 %s516, 1
        %s2146 = smul.addr %s2145, 16
        %s2147 = scalar_lea.vmem [#allocation2], %s2146
        // Predicated region
        $region109: #{tpu_custom_call.1} parent=107 // pred_check
          %p2148 = pneg %p526
        $region110: #{tpu_custom_call.1} parent=107 // pred_check_branch
          %2150 = sbr.rel (%p2148) target = $region112
        $region111: #{tpu_custom_call.1} parent=107 // pred_region
          %s2152 = ssub.s32 256, 256
          %2153 = vsyncadd %s2144, %s2152
          %s2154 = smul.addr %s36, 2
          %s2155 = smul.addr %s2154, 128
          %s2156 = scalar_lea.hbm %s22, %s2155
          %s2157 = sshll.u32 %s2147, 4
          %s2158 = int_to_ptr.vmem [resolvable:$true] %s2157
          %2163 = dma.vmem_to_hbm [thread:$0]  %s2158, 256, %s2156, %s2144, 128, 128, 8
        $region112: #{tpu_custom_call.1} parent=107 // pred_fallthru
          _
      $region108: #{tpu_custom_call.1} parent=5 // pred_fallthru
        _
      %p2164 = scmp.le.s32.totalorder 2, %s31
      // Predicated region
      $region113: #{tpu_custom_call.1} parent=5 // pred_check
        %p2165 = pneg %p2164
      $region114: #{tpu_custom_call.1} parent=5 // pred_check_branch
        %2167 = sbr.rel (%p2165) target = $region116
      $region115: #{tpu_custom_call.1} parent=5 // pred_region
        %s2168 = ssub.s32 %s31, 2
        // Predicated region
        $region117: #{tpu_custom_call.1} parent=115 // pred_check
          %p2169 = pneg %p532
        $region118: #{tpu_custom_call.1} parent=115 // pred_check_branch
          %2171 = sbr.rel (%p2169) target = $region120
        $region119: #{tpu_custom_call.1} parent=115 // pred_region
          %s2172 = sand.u32 %s517, 1
          %s2173 = scalar_lea.sflag [#allocation3], %s2172
          %s2174 = sand.u32 %s517, 1
          %s2175 = smul.addr %s2174, 16
          %s2176 = scalar_lea.vmem [#allocation2], %s2175
          %2177 = dma.done %s2173, 256
        $region120: #{tpu_custom_call.1} parent=115 // pred_fallthru
          _
      $region116: #{tpu_custom_call.1} parent=5 // pred_fallthru
        _
    $region6: #{tpu_custom_call.1} parent=1 // loop_footer
      %s35 = sadd.s32 1, %s31
    $region7: #{tpu_custom_call.1} parent=1 // loop_footer_branch
      %30 = sbr.rel target = $region3
    $region8: #{tpu_custom_call.1} parent=1 // loop_exit
      _
    %2178 = vsyncpa [#allocation3], 1
    %s2179 = scalar_lea.sflag [#allocation3], 1
    %2180 = vsyncpa %s2179, 1

</llo_original>
